<compile_context>
chip_gen: v7x
topology: tpu7x:2x2x1
jax: 0.10.0
libtpu: 0.0.40
codegen_flags: <defaults>
</compile_context>

<pallas_src>
import math

import jax
import jax.numpy as jnp
from jax.experimental import pallas as pl
from jax.experimental.pallas import tpu as pltpu

_EPS = 1e-5
_MXU_DTYPE = jnp.bfloat16     # MXU operand dtype; accumulation stays f32
_ACT_DTYPE = jnp.bfloat16     # inter-kernel activation storage (halves HBM traffic)
_LANE = 128


def _pad_to_lane(n):
    return ((n + _LANE - 1) // _LANE) * _LANE


# --------------------------------------------------------------------------- #
# Generation-aware configuration
# --------------------------------------------------------------------------- #
def _gen_config():
    """(vmem budget for tiling, vmem_limit_bytes, use bf16 softmax exp, mxu floor)."""
    vmem_cap = 64 * 1024 * 1024
    try:
        vmem_cap = int(pltpu.get_tpu_info().vmem_capacity_bytes)
    except Exception:
        pass
    if vmem_cap >= 100 * 1024 * 1024:        # v5e / v6e: 128 MiB physical VMEM
        budget = 88 * 1024 * 1024
        limit = 100 * 1024 * 1024
    else:                                     # v7x (64 MiB) or unknown: be safe
        budget = 36 * 1024 * 1024
        limit = 48 * 1024 * 1024

    bf16_exp = False                          # v5e and older: no bf16 VPU/EUP
    mxu_floor = 256                           # v6e/v7x MXU is 256-wide
    try:
        kind = jax.devices()[0].device_kind.lower()
        old = any(g in kind for g in ("v2", "v3", "v4", "v5"))
        if "tpu" in kind and not old:
            bf16_exp = True                   # v6e / v7x
        if old:
            mxu_floor = 128                   # v5e MXU is 128-wide
    except Exception:
        pass
    return budget, limit, bf16_exp, mxu_floor


def _pick_tile_b(B, S, D, H, num_lin, budget_bytes, mxu_floor):
    """Largest batch tile dividing B whose honest working set fits the VMEM
    budget, preferring >= 2 grid steps so both v7x TensorCores get work."""
    divisors = [t for t in range(1, B + 1) if B % t == 0]

    def fits(t):
        scores = 3 * t * S * S * 4                      # scores + p + w (f32 worst case)
        acts = 10 * t * S * max(D, H) * 4               # dbl-buffered IO + f32 copies
        weights = 2 * num_lin * (D * H * 2 + H * 4)     # dbl-buffered bf16 W + f32 b
        return scores + acts + weights <= budget_bytes

    fitting = [t for t in divisors if fits(t)] or [1]
    multi = [t for t in fitting if B // t >= 2]         # keep both v7x cores busy
    if multi:
        # MXU-fill floor (tile_b * S >= MXU width) is a minimum, not a target;
        # picking the largest fitting tile already maximizes it.
        pref = [t for t in multi if t * S >= mxu_floor]
        return (pref or multi)[-1]
    return fitting[-1]


# --------------------------------------------------------------------------- #
# Kernels
# --------------------------------------------------------------------------- #
def _make_attn_kernel(inv_sqrt_d, use_bf16_exp):
    """(prev-block BN apply) + self-attention + residual for one batch tile,
    plus partial sum / sum-of-squares for this block's attn_norm."""

    def kernel(scale_ref, shift_ref, x_ref, attn_ref, sum_ref, sq_ref):
        x = x_ref[...].astype(jnp.float32)                       # (t, S, Dp)
        t, s, d = x.shape
        sc = scale_ref[...].reshape(1, 1, d)
        sh = shift_ref[...].reshape(1, 1, d)
        x = x * sc + sh                                          # folded BN affine

        xq = (x * inv_sqrt_d).astype(_MXU_DTYPE)                 # fold 1/sqrt(D) into
        xk = x.astype(_MXU_DTYPE)                                # one operand

        scores = jnp.einsum('bid,bjd->bij', xq, xk,
                            preferred_element_type=jnp.float32)  # (t, S, S) f32 acc
        # softmax over dim=1 (query axis) — matches F.softmax(scores, dim=1)
        m = jnp.max(scores, axis=1, keepdims=True)
        diff = scores - m
        if use_bf16_exp:                                         # v6e / v7x only
            p = jnp.exp(diff.astype(jnp.bfloat16))
            denom = jnp.sum(p, axis=1, keepdims=True, dtype=jnp.float32)
            w = p * pl.reciprocal(denom, approx=True).astype(jnp.bfloat16)
        else:                                                    # v5e: f32 VPU/EUP
            p = jnp.exp(diff)
            denom = jnp.sum(p, axis=1, keepdims=True)
            w = (p * pl.reciprocal(denom, approx=True)).astype(_MXU_DTYPE)

        attn = jnp.einsum('bij,bjd->bid', w, xk,
                          preferred_element_type=jnp.float32)
        attn = attn + x                                          # residual
        attn_ref[...] = attn.astype(attn_ref.dtype)              # bf16 storage

        # TODO(synk): single-pass E[x^2]-mean^2 is cancellation-prone for large
        # |mean|/std; switch to shifted accumulation if activations drift.
        flat = attn.reshape(t * s, d)
        sum_ref[...] = jnp.sum(flat, axis=0, keepdims=True).reshape(1, 1, d)
        sq_ref[...] = jnp.sum(flat * flat, axis=0, keepdims=True).reshape(1, 1, d)

    return kernel


def _make_mlp_kernel(num_lin):
    """attn_norm apply + Linear/ReLU stack + residual for one batch tile,
    plus partial stats for this block's lin_norm."""

    def kernel(*refs):
        scale_ref, shift_ref, a_ref = refs[0], refs[1], refs[2]
        wb = refs[3:3 + 2 * num_lin]
        h_ref, sum_ref, sq_ref = refs[3 + 2 * num_lin:]

        a = a_ref[...].astype(jnp.float32)                       # (t, S, Dp)
        t, s, d = a.shape
        sc = scale_ref[...].reshape(1, 1, d)
        sh = shift_ref[...].reshape(1, 1, d)
        a = a * sc + sh                                          # attn_norm (global)
        flat = a.reshape(t * s, d)

        h = flat
        for li in range(num_lin):
            w = wb[2 * li][...]                                  # bf16 (in, out)
            b = wb[2 * li + 1][...]                              # f32 (1, out)
            h = jnp.dot(h.astype(_MXU_DTYPE), w,
                        preferred_element_type=jnp.float32) + b
            h = jnp.maximum(h, 0.0)
        h = h + flat                                             # residual (idim==hdim)

        hd = h.shape[-1]
        h_ref[...] = h.reshape(t, s, hd).astype(h_ref.dtype)     # bf16 storage
        sum_ref[...] = jnp.sum(h, axis=0, keepdims=True).reshape(1, 1, hd)
        sq_ref[...] = jnp.sum(h * h, axis=0, keepdims=True).reshape(1, 1, hd)

    return kernel


# --------------------------------------------------------------------------- #
# pallas_call wrappers (batch-tiled grids)
# --------------------------------------------------------------------------- #
# NOTE: scale/shift and the MLP weights are grid-invariant; single-buffering
# them (pipeline_mode=pl.Buffered(1)) would shave a little VMEM but is skipped
# here for portability across Pallas versions.
def _attention_call(x_bsd, scale, shift, tile_b, inv_sqrt_d, use_bf16_exp, cp):
    B, S, D = x_bsd.shape
    nb = B // tile_b
    return pl.pallas_call(
        _make_attn_kernel(inv_sqrt_d, use_bf16_exp),
        out_shape=(jax.ShapeDtypeStruct((B, S, D), _ACT_DTYPE),
                   jax.ShapeDtypeStruct((nb, 1, D), jnp.float32),
                   jax.ShapeDtypeStruct((nb, 1, D), jnp.float32)),
        grid=(nb,),
        in_specs=[pl.BlockSpec((1, D), lambda j: (0, 0)),
                  pl.BlockSpec((1, D), lambda j: (0, 0)),
                  pl.BlockSpec((tile_b, S, D), lambda j: (j, 0, 0))],
        out_specs=[pl.BlockSpec((tile_b, S, D), lambda j: (j, 0, 0)),
                   pl.BlockSpec((1, 1, D), lambda j: (j, 0, 0)),
                   pl.BlockSpec((1, 1, D), lambda j: (j, 0, 0))],
        compiler_params=cp,
    )(scale, shift, x_bsd)


def _mlp_call(attn_bsd, scale1, shift1, ws_bf16, bs, tile_b, cp):
    B, S, D = attn_bsd.shape
    H = ws_bf16[-1].shape[1]
    nb = B // tile_b
    args = [scale1, shift1, attn_bsd]
    in_specs = [pl.BlockSpec((1, D), lambda j: (0, 0)),
                pl.BlockSpec((1, D), lambda j: (0, 0)),
                pl.BlockSpec((tile_b, S, D), lambda j: (j, 0, 0))]
    for w, b in zip(ws_bf16, bs):
        args += [w, b]
        in_specs += [pl.BlockSpec(w.shape, lambda j: (0, 0)),
                     pl.BlockSpec(b.shape, lambda j: (0, 0))]
    return pl.pallas_call(
        _make_mlp_kernel(len(ws_bf16)),
        out_shape=(jax.ShapeDtypeStruct((B, S, H), _ACT_DTYPE),
                   jax.ShapeDtypeStruct((nb, 1, H), jnp.float32),
                   jax.ShapeDtypeStruct((nb, 1, H), jnp.float32)),
        grid=(nb,),
        in_specs=in_specs,
        out_specs=[pl.BlockSpec((tile_b, S, H), lambda j: (j, 0, 0)),
                   pl.BlockSpec((1, 1, H), lambda j: (j, 0, 0)),
                   pl.BlockSpec((1, 1, H), lambda j: (j, 0, 0))],
        compiler_params=cp,
    )(*args)


# --------------------------------------------------------------------------- #
# Feature-dim padding helpers (lane-dense, zero-padded; padded gamma/beta = 0
# keep padded channels exactly zero through every block)
# --------------------------------------------------------------------------- #
def _pad_vec(v, dp):
    d = v.shape[-1]
    return v if d == dp else jnp.pad(v, ((0, 0), (0, dp - d)))


def _pad_mat(w, ip, op):
    i, o = w.shape
    return w if (i == ip and o == op) else jnp.pad(w, ((0, ip - i), (0, op - o)))


# --------------------------------------------------------------------------- #
# Forward pass
# --------------------------------------------------------------------------- #
def attention_encoder_forward_bsd(x_bsd, params, tile_b=None, eps=_EPS):
    """x_bsd: (batch, seq, idim) -> (batch, seq, hdim). No layout transposes."""
    B, S, D = x_bsd.shape
    H = params[-1]['ws'][-1].shape[1]
    assert D == H, "module residuals require idim == hdim"
    Dp = _pad_to_lane(D)
    num_lin = len(params[0]['ws'])

    budget, vmem_limit, use_bf16_exp, mxu_floor = _gen_config()
    compiler_params = pltpu.CompilerParams(
        dimension_semantics=("parallel",),        # batch tiles are independent
        vmem_limit_bytes=vmem_limit)

    if tile_b is None:
        tile_b = _pick_tile_b(B, S, Dp, Dp, num_lin, budget, mxu_floor)
    assert B % tile_b == 0, (B, tile_b)

    n = float(B * S)
    inv_sqrt_d = 1.0 / math.sqrt(D)               # original feature dim, not padded

    act = x_bsd.astype(jnp.float32)
    if Dp != D:
        act = jnp.pad(act, ((0, 0), (0, 0), (0, Dp - D)))

    # BN affine carried from the previous block's lin_norm (identity at entry)
    scale = jnp.ones((1, Dp), jnp.float32)
    shift = jnp.zeros((1, Dp), jnp.float32)

    for bp in params:
        ga, ba = _pad_vec(bp['ga'], Dp), _pad_vec(bp['ba'], Dp)
        gl, bl = _pad_vec(bp['gl'], Dp), _pad_vec(bp['bl'], Dp)
        ws_src = bp.get('ws_bf16') or [w.astype(_MXU_DTYPE) for w in bp['ws']]
        ws = [_pad_mat(w, Dp, Dp) for w in ws_src]
        bs = [_pad_vec(b, Dp) for b in bp['bs']]

        # attention + residual, plus partial attn_norm stats
        attn, s1, q1 = _attention_call(act, scale, shift, tile_b,
                                       inv_sqrt_d, use_bf16_exp, compiler_params)
        mu1 = jnp.sum(s1, axis=(0, 1)) / n
        var1 = jnp.sum(q1, axis=(0, 1)) / n - mu1 * mu1          # single-pass, biased
        sc1 = ga[0] * jax.lax.rsqrt(var1 + eps)
        sh1 = ba[0] - mu1 * sc1

        # attn_norm apply + Linear/ReLU stack + residual, plus lin_norm stats
        h, s2, q2 = _mlp_call(attn, sc1[None], sh1[None], ws, bs, tile_b,
                              compiler_params)
        mu2 = jnp.sum(s2, axis=(0, 1)) / n
        var2 = jnp.sum(q2, axis=(0, 1)) / n - mu2 * mu2
        sc2 = gl[0] * jax.lax.rsqrt(var2 + eps)
        sh2 = bl[0] - mu2 * sc2

        # lin_norm apply is folded into the next block's attention kernel
        scale, shift = sc2[None], sh2[None]
        act = h

    # last block's lin_norm affine: plain XLA elementwise (fuses into consumer)
    out = act.astype(jnp.float32) * scale + shift
    return out[..., :H] if Dp != H else out


def attention_encoder_forward(x_sbd, params, tile_b=None):
    """PyTorch layout: (seq_len, batch, idim) -> (seq_len, batch, hdim)."""
    x = jnp.transpose(x_sbd, (1, 0, 2))
    y = attention_encoder_forward_bsd(x, params, tile_b=tile_b)
    return jnp.transpose(y, (1, 0, 2))


# --------------------------------------------------------------------------- #
# Parameter init (matches the PyTorch module's __init__)
# --------------------------------------------------------------------------- #
def init_params(key, idim, hdim, num_lin=1, blocks=1):
    """Linear weights: kaiming_normal (std=sqrt(2/fan_in)), stored (in, out),
    plus a pre-cast bf16 copy for the MXU. Linear biases: U(-1/sqrt(fan_in), ..).
    BatchNorm: gamma=1, beta=0."""
    params = []
    d_in = idim
    for _ in range(blocks):
        ws, bs = [], []
        for li in range(num_lin):
            fan_in = d_in if li == 0 else hdim
            key, kw, kb = jax.random.split(key, 3)
            w = jax.random.normal(kw, (fan_in, hdim), jnp.float32) * jnp.sqrt(
                2.0 / fan_in)
            bound = 1.0 / math.sqrt(fan_in)
            b = jax.random.uniform(kb, (1, hdim), jnp.float32, -bound, bound)
            ws.append(w)
            bs.append(b)
        params.append(dict(
            ws=ws,
            ws_bf16=[w.astype(_MXU_DTYPE) for w in ws],   # pre-cast once
            bs=bs,
            ga=jnp.ones((1, d_in), jnp.float32),
            ba=jnp.zeros((1, d_in), jnp.float32),
            gl=jnp.ones((1, hdim), jnp.float32),
            bl=jnp.zeros((1, hdim), jnp.float32),
        ))
        d_in = hdim
    return params


# --------------------------------------------------------------------------- #
# Pure-JAX reference (f32 everywhere) for correctness checking
# --------------------------------------------------------------------------- #
def reference_forward(x_sbd, params, eps=_EPS):
    x = jnp.transpose(x_sbd, (1, 0, 2))  # (B, S, D)
    for p in params:
        D = x.shape[-1]
        scores = jnp.einsum('bid,bjd->bij', x, x) / jnp.sqrt(jnp.float32(D))
        w = jax.nn.softmax(scores, axis=1)
        attn = jnp.einsum('bij,bjd->bid', w, x) + x
        mu = attn.mean(axis=(0, 1), keepdims=True)
        var = ((attn - mu) ** 2).mean(axis=(0, 1), keepdims=True)
        attn = (attn - mu) / jnp.sqrt(var + eps) * p['ga'] + p['ba']
        h = attn
        for wt, b in zip(p['ws'], p['bs']):
            h = jax.nn.relu(jnp.einsum('bsd,dh->bsh', h, wt) + b)
        h = h + attn
        mu = h.mean(axis=(0, 1), keepdims=True)
        var = ((h - mu) ** 2).mean(axis=(0, 1), keepdims=True)
        x = (h - mu) / jnp.sqrt(var + eps) * p['gl'] + p['bl']
    return jnp.transpose(x, (1, 0, 2))


if __name__ == "__main__":
    # idim == hdim is required by the module's residual sums.
    SEQ, BATCH, IDIM, HDIM = 16, 16, 32, 32
    NUM_LIN, BLOCKS = 2, 2
    TILE_B = 4                       # small tile to exercise the multi-tile BN path

    key = jax.random.PRNGKey(0)
    key, kx = jax.random.split(key)
    x = jax.random.normal(kx, (SEQ, BATCH, IDIM), jnp.float32)
    params = init_params(key, IDIM, HDIM, num_lin=NUM_LIN, blocks=BLOCKS)

    fwd = jax.jit(lambda xx, pp: attention_encoder_forward(xx, pp, tile_b=TILE_B))
    out = jax.block_until_ready(fwd(x, params))
    assert out.shape == (SEQ, BATCH, HDIM)

    ref = reference_forward(x, params)
    max_err = float(jnp.max(jnp.abs(out - ref)))
    rel_err = float(jnp.linalg.norm(out - ref) / jnp.linalg.norm(ref))
    # bf16 MXU operands + bf16 inter-kernel activation storage + approx
    # reciprocal (and bf16 softmax exp on v6e/v7x) across 2 blocks.
    assert max_err < 1e-1 and rel_err < 3e-2, (max_err, rel_err)

    print("KERNEL_OK")
</pallas_src>

<mosaic_0001>
module attributes {stable_mosaic.version = 11 : i64} {
  func.func @kernel(%arg0: i32, %arg1: memref<1x128xf32, #tpu.memory_space<vmem>>, %arg2: memref<1x128xf32, #tpu.memory_space<vmem>>, %arg3: memref<4x16x128xf32, #tpu.memory_space<vmem>>, %arg4: memref<4x16x128xbf16, #tpu.memory_space<vmem>>, %arg5: memref<1x1x128xf32, #tpu.memory_space<vmem>>, %arg6: memref<1x1x128xf32, #tpu.memory_space<vmem>>) attributes {dimension_semantics = [#tpu.dimension_semantics<parallel>], iteration_bounds = array<i64: 4>, scalar_prefetch = 0 : i64, scratch_operands = 0 : i64, tpu.core_type = #tpu.core_type<tc>, window_params = [{pipeline_mode = #tpu.pipeline_mode<synchronous>, transform_indices = @transform_0, window_bounds = array<i64: 1, 128>}, {pipeline_mode = #tpu.pipeline_mode<synchronous>, transform_indices = @transform_1, window_bounds = array<i64: 1, 128>}, {transform_indices = @transform_2, window_bounds = array<i64: 4, 16, 128>}, {transform_indices = @transform_3, window_bounds = array<i64: 4, 16, 128>}, {transform_indices = @transform_4, window_bounds = array<i64: 1, 1, 128>}, {transform_indices = @transform_5, window_bounds = array<i64: 1, 1, 128>}]} {
    %c0 = arith.constant 0 : index
    %c0_0 = arith.constant 0 : index
    %c0_1 = arith.constant 0 : index
    %0 = vector.load %arg3[%c0, %c0_0, %c0_1] : memref<4x16x128xf32, #tpu.memory_space<vmem>>, vector<4x16x128xf32>
    %c0_2 = arith.constant 0 : index
    %c0_3 = arith.constant 0 : index
    %1 = vector.load %arg1[%c0_2, %c0_3] : memref<1x128xf32, #tpu.memory_space<vmem>>, vector<1x128xf32>
    %2 = vector.shape_cast %1 : vector<1x128xf32> to vector<1x1x128xf32>
    %c0_4 = arith.constant 0 : index
    %c0_5 = arith.constant 0 : index
    %3 = vector.load %arg2[%c0_4, %c0_5] : memref<1x128xf32, #tpu.memory_space<vmem>>, vector<1x128xf32>
    %4 = vector.shape_cast %3 : vector<1x128xf32> to vector<1x1x128xf32>
    %5 = vector.broadcast %2 : vector<1x1x128xf32> to vector<4x16x128xf32>
    %6 = arith.mulf %0, %5 : vector<4x16x128xf32>
    %7 = vector.broadcast %4 : vector<1x1x128xf32> to vector<4x16x128xf32>
    %8 = arith.addf %6, %7 : vector<4x16x128xf32>
    %cst = arith.constant 0.176776692 : f32
    %9 = vector.broadcast %cst : f32 to vector<4x16x128xf32>
    %10 = arith.mulf %8, %9 : vector<4x16x128xf32>
    %11 = arith.truncf %10 : vector<4x16x128xf32> to vector<4x16x128xbf16>
    %12 = arith.truncf %8 : vector<4x16x128xf32> to vector<4x16x128xbf16>
    "tpu.trace_start"() <{level = 10 : i32, message = "bid,bjd->bij"}> : () -> ()
    %cst_6 = arith.constant dense<0.000000e+00> : vector<4x16x16xf32>
    %13 = tpu.matmul %11, %12, %cst_6 {dimension_numbers = #tpu.dot_dimension_numbers<[2], [2], [1], [1], [0, 0, 0, 1, 1, 1], [0], [0]>} : vector<4x16x128xbf16>, vector<4x16x128xbf16>, vector<4x16x16xf32> -> vector<4x16x16xf32>
    "tpu.trace_stop"() : () -> ()
    %cst_7 = arith.constant dense<0xFF800000> : vector<4x16xf32>
    %14 = vector.multi_reduction <maximumf>, %13, %cst_7 [1] : vector<4x16x16xf32> to vector<4x16xf32>
    %15 = vector.shape_cast %14 : vector<4x16xf32> to vector<4x1x16xf32>
    %16 = vector.broadcast %15 : vector<4x1x16xf32> to vector<4x16x16xf32>
    %17 = arith.subf %13, %16 : vector<4x16x16xf32>
    %18 = math.exp %17 : vector<4x16x16xf32>
    %cst_8 = arith.constant dense<0.000000e+00> : vector<4x16xf32>
    %19 = vector.multi_reduction <add>, %18, %cst_8 [1] : vector<4x16x16xf32> to vector<4x16xf32>
    %20 = vector.shape_cast %19 : vector<4x16xf32> to vector<4x1x16xf32>
    %21 = tpu.reciprocal %20 {approx = true} : vector<4x1x16xf32> -> vector<4x1x16xf32>
    %22 = vector.broadcast %21 : vector<4x1x16xf32> to vector<4x16x16xf32>
    %23 = arith.mulf %18, %22 : vector<4x16x16xf32>
    %24 = arith.truncf %23 : vector<4x16x16xf32> to vector<4x16x16xbf16>
    "tpu.trace_start"() <{level = 10 : i32, message = "bij,bjd->bid"}> : () -> ()
    %cst_9 = arith.constant dense<0.000000e+00> : vector<4x16x128xf32>
    %25 = tpu.matmul %24, %12, %cst_9 {dimension_numbers = #tpu.dot_dimension_numbers<[2], [1], [1], [2], [0, 0, 0, 1, 1, 2], [0], [0]>} : vector<4x16x16xbf16>, vector<4x16x128xbf16>, vector<4x16x128xf32> -> vector<4x16x128xf32>
    "tpu.trace_stop"() : () -> ()
    %26 = arith.addf %25, %8 : vector<4x16x128xf32>
    %27 = arith.truncf %26 : vector<4x16x128xf32> to vector<4x16x128xbf16>
    %c0_10 = arith.constant 0 : index
    %c0_11 = arith.constant 0 : index
    %c0_12 = arith.constant 0 : index
    %28 = vector.load %arg4[%c0_10, %c0_11, %c0_12] : memref<4x16x128xbf16, #tpu.memory_space<vmem>>, vector<4x16x128xbf16>
    tpu.vector_store %arg4[%c0_10, %c0_11, %c0_12], %27 {strides = array<i32>} : memref<4x16x128xbf16, #tpu.memory_space<vmem>>, vector<4x16x128xbf16>,
    %29 = vector.shape_cast %26 : vector<4x16x128xf32> to vector<64x128xf32>
    %cst_13 = arith.constant dense<0.000000e+00> : vector<128xf32>
    %30 = vector.multi_reduction <add>, %29, %cst_13 [0] : vector<64x128xf32> to vector<128xf32>
    %31 = vector.shape_cast %30 : vector<128xf32> to vector<1x128xf32>
    %32 = vector.shape_cast %31 : vector<1x128xf32> to vector<1x1x128xf32>
    %c0_14 = arith.constant 0 : index
    %c0_15 = arith.constant 0 : index
    %c0_16 = arith.constant 0 : index
    %33 = vector.load %arg5[%c0_14, %c0_15, %c0_16] : memref<1x1x128xf32, #tpu.memory_space<vmem>>, vector<1x1x128xf32>
    tpu.vector_store %arg5[%c0_14, %c0_15, %c0_16], %32 {strides = array<i32>} : memref<1x1x128xf32, #tpu.memory_space<vmem>>, vector<1x1x128xf32>,
    %34 = arith.mulf %29, %29 : vector<64x128xf32>
    %cst_17 = arith.constant dense<0.000000e+00> : vector<128xf32>
    %35 = vector.multi_reduction <add>, %34, %cst_17 [0] : vector<64x128xf32> to vector<128xf32>
    %36 = vector.shape_cast %35 : vector<128xf32> to vector<1x128xf32>
    %37 = vector.shape_cast %36 : vector<1x128xf32> to vector<1x1x128xf32>
    %c0_18 = arith.constant 0 : index
    %c0_19 = arith.constant 0 : index
    %c0_20 = arith.constant 0 : index
    %38 = vector.load %arg6[%c0_18, %c0_19, %c0_20] : memref<1x1x128xf32, #tpu.memory_space<vmem>>, vector<1x1x128xf32>
    tpu.vector_store %arg6[%c0_18, %c0_19, %c0_20], %37 {strides = array<i32>} : memref<1x1x128xf32, #tpu.memory_space<vmem>>, vector<1x1x128xf32>,
    return
  }
  func.func @transform_0(%arg0: i32) -> (i32, i32) {
    %c0_i32 = arith.constant 0 : i32
    %c0_i32_0 = arith.constant 0 : i32
    %c0_i32_1 = arith.constant 0 : i32
    return %c0_i32, %c0_i32_0 : i32, i32
  }
  func.func @transform_1(%arg0: i32) -> (i32, i32) {
    %c0_i32 = arith.constant 0 : i32
    %c0_i32_0 = arith.constant 0 : i32
    %c0_i32_1 = arith.constant 0 : i32
    return %c0_i32, %c0_i32_0 : i32, i32
  }
  func.func @transform_2(%arg0: i32) -> (i32, i32, i32) {
    %c0_i32 = arith.constant 0 : i32
    %c0_i32_0 = arith.constant 0 : i32
    %c0_i32_1 = arith.constant 0 : i32
    return %arg0, %c0_i32, %c0_i32_0 : i32, i32, i32
  }
  func.func @transform_3(%arg0: i32) -> (i32, i32, i32) {
    %c0_i32 = arith.constant 0 : i32
    %c0_i32_0 = arith.constant 0 : i32
    %c0_i32_1 = arith.constant 0 : i32
    return %arg0, %c0_i32, %c0_i32_0 : i32, i32, i32
  }
  func.func @transform_4(%arg0: i32) -> (i32, i32, i32) {
    %c0_i32 = arith.constant 0 : i32
    %c0_i32_0 = arith.constant 0 : i32
    %c0_i32_1 = arith.constant 0 : i32
    return %arg0, %c0_i32, %c0_i32_0 : i32, i32, i32
  }
  func.func @transform_5(%arg0: i32) -> (i32, i32, i32) {
    %c0_i32 = arith.constant 0 : i32
    %c0_i32_0 = arith.constant 0 : i32
    %c0_i32_1 = arith.constant 0 : i32
    return %arg0, %c0_i32, %c0_i32_0 : i32, i32, i32
  }
}

module attributes {stable_mosaic.version = 11 : i64} {
  func.func @kernel(%arg0: i32, %arg1: memref<1x128xf32, #tpu.memory_space<vmem>>, %arg2: memref<1x128xf32, #tpu.memory_space<vmem>>, %arg3: memref<4x16x128xbf16, #tpu.memory_space<vmem>>, %arg4: memref<4x16x128xbf16, #tpu.memory_space<vmem>>, %arg5: memref<1x1x128xf32, #tpu.memory_space<vmem>>, %arg6: memref<1x1x128xf32, #tpu.memory_space<vmem>>) attributes {dimension_semantics = [#tpu.dimension_semantics<parallel>], iteration_bounds = array<i64: 4>, scalar_prefetch = 0 : i64, scratch_operands = 0 : i64, tpu.core_type = #tpu.core_type<tc>, window_params = [{pipeline_mode = #tpu.pipeline_mode<synchronous>, transform_indices = @transform_0, window_bounds = array<i64: 1, 128>}, {pipeline_mode = #tpu.pipeline_mode<synchronous>, transform_indices = @transform_1, window_bounds = array<i64: 1, 128>}, {transform_indices = @transform_2, window_bounds = array<i64: 4, 16, 128>}, {transform_indices = @transform_3, window_bounds = array<i64: 4, 16, 128>}, {transform_indices = @transform_4, window_bounds = array<i64: 1, 1, 128>}, {transform_indices = @transform_5, window_bounds = array<i64: 1, 1, 128>}]} {
    %c0 = arith.constant 0 : index
    %c0_0 = arith.constant 0 : index
    %c0_1 = arith.constant 0 : index
    %0 = vector.load %arg3[%c0, %c0_0, %c0_1] : memref<4x16x128xbf16, #tpu.memory_space<vmem>>, vector<4x16x128xbf16>
    %1 = arith.extf %0 : vector<4x16x128xbf16> to vector<4x16x128xf32>
    %c0_2 = arith.constant 0 : index
    %c0_3 = arith.constant 0 : index
    %2 = vector.load %arg1[%c0_2, %c0_3] : memref<1x128xf32, #tpu.memory_space<vmem>>, vector<1x128xf32>
    %3 = vector.shape_cast %2 : vector<1x128xf32> to vector<1x1x128xf32>
    %c0_4 = arith.constant 0 : index
    %c0_5 = arith.constant 0 : index
    %4 = vector.load %arg2[%c0_4, %c0_5] : memref<1x128xf32, #tpu.memory_space<vmem>>, vector<1x128xf32>
    %5 = vector.shape_cast %4 : vector<1x128xf32> to vector<1x1x128xf32>
    %6 = vector.broadcast %3 : vector<1x1x128xf32> to vector<4x16x128xf32>
    %7 = arith.mulf %1, %6 : vector<4x16x128xf32>
    %8 = vector.broadcast %5 : vector<1x1x128xf32> to vector<4x16x128xf32>
    %9 = arith.addf %7, %8 : vector<4x16x128xf32>
    %cst = arith.constant 0.176776692 : f32
    %10 = vector.broadcast %cst : f32 to vector<4x16x128xf32>
    %11 = arith.mulf %9, %10 : vector<4x16x128xf32>
    %12 = arith.truncf %11 : vector<4x16x128xf32> to vector<4x16x128xbf16>
    %13 = arith.truncf %9 : vector<4x16x128xf32> to vector<4x16x128xbf16>
    "tpu.trace_start"() <{level = 10 : i32, message = "bid,bjd->bij"}> : () -> ()
    %cst_6 = arith.constant dense<0.000000e+00> : vector<4x16x16xf32>
    %14 = tpu.matmul %12, %13, %cst_6 {dimension_numbers = #tpu.dot_dimension_numbers<[2], [2], [1], [1], [0, 0, 0, 1, 1, 1], [0], [0]>} : vector<4x16x128xbf16>, vector<4x16x128xbf16>, vector<4x16x16xf32> -> vector<4x16x16xf32>
    "tpu.trace_stop"() : () -> ()
    %cst_7 = arith.constant dense<0xFF800000> : vector<4x16xf32>
    %15 = vector.multi_reduction <maximumf>, %14, %cst_7 [1] : vector<4x16x16xf32> to vector<4x16xf32>
    %16 = vector.shape_cast %15 : vector<4x16xf32> to vector<4x1x16xf32>
    %17 = vector.broadcast %16 : vector<4x1x16xf32> to vector<4x16x16xf32>
    %18 = arith.subf %14, %17 : vector<4x16x16xf32>
    %19 = math.exp %18 : vector<4x16x16xf32>
    %cst_8 = arith.constant dense<0.000000e+00> : vector<4x16xf32>
    %20 = vector.multi_reduction <add>, %19, %cst_8 [1] : vector<4x16x16xf32> to vector<4x16xf32>
    %21 = vector.shape_cast %20 : vector<4x16xf32> to vector<4x1x16xf32>
    %22 = tpu.reciprocal %21 {approx = true} : vector<4x1x16xf32> -> vector<4x1x16xf32>
    %23 = vector.broadcast %22 : vector<4x1x16xf32> to vector<4x16x16xf32>
    %24 = arith.mulf %19, %23 : vector<4x16x16xf32>
    %25 = arith.truncf %24 : vector<4x16x16xf32> to vector<4x16x16xbf16>
    "tpu.trace_start"() <{level = 10 : i32, message = "bij,bjd->bid"}> : () -> ()
    %cst_9 = arith.constant dense<0.000000e+00> : vector<4x16x128xf32>
    %26 = tpu.matmul %25, %13, %cst_9 {dimension_numbers = #tpu.dot_dimension_numbers<[2], [1], [1], [2], [0, 0, 0, 1, 1, 2], [0], [0]>} : vector<4x16x16xbf16>, vector<4x16x128xbf16>, vector<4x16x128xf32> -> vector<4x16x128xf32>
    "tpu.trace_stop"() : () -> ()
    %27 = arith.addf %26, %9 : vector<4x16x128xf32>
    %28 = arith.truncf %27 : vector<4x16x128xf32> to vector<4x16x128xbf16>
    %c0_10 = arith.constant 0 : index
    %c0_11 = arith.constant 0 : index
    %c0_12 = arith.constant 0 : index
    %29 = vector.load %arg4[%c0_10, %c0_11, %c0_12] : memref<4x16x128xbf16, #tpu.memory_space<vmem>>, vector<4x16x128xbf16>
    tpu.vector_store %arg4[%c0_10, %c0_11, %c0_12], %28 {strides = array<i32>} : memref<4x16x128xbf16, #tpu.memory_space<vmem>>, vector<4x16x128xbf16>,
    %30 = vector.shape_cast %27 : vector<4x16x128xf32> to vector<64x128xf32>
    %cst_13 = arith.constant dense<0.000000e+00> : vector<128xf32>
    %31 = vector.multi_reduction <add>, %30, %cst_13 [0] : vector<64x128xf32> to vector<128xf32>
    %32 = vector.shape_cast %31 : vector<128xf32> to vector<1x128xf32>
    %33 = vector.shape_cast %32 : vector<1x128xf32> to vector<1x1x128xf32>
    %c0_14 = arith.constant 0 : index
    %c0_15 = arith.constant 0 : index
    %c0_16 = arith.constant 0 : index
    %34 = vector.load %arg5[%c0_14, %c0_15, %c0_16] : memref<1x1x128xf32, #tpu.memory_space<vmem>>, vector<1x1x128xf32>
    tpu.vector_store %arg5[%c0_14, %c0_15, %c0_16], %33 {strides = array<i32>} : memref<1x1x128xf32, #tpu.memory_space<vmem>>, vector<1x1x128xf32>,
    %35 = arith.mulf %30, %30 : vector<64x128xf32>
    %cst_17 = arith.constant dense<0.000000e+00> : vector<128xf32>
    %36 = vector.multi_reduction <add>, %35, %cst_17 [0] : vector<64x128xf32> to vector<128xf32>
    %37 = vector.shape_cast %36 : vector<128xf32> to vector<1x128xf32>
    %38 = vector.shape_cast %37 : vector<1x128xf32> to vector<1x1x128xf32>
    %c0_18 = arith.constant 0 : index
    %c0_19 = arith.constant 0 : index
    %c0_20 = arith.constant 0 : index
    %39 = vector.load %arg6[%c0_18, %c0_19, %c0_20] : memref<1x1x128xf32, #tpu.memory_space<vmem>>, vector<1x1x128xf32>
    tpu.vector_store %arg6[%c0_18, %c0_19, %c0_20], %38 {strides = array<i32>} : memref<1x1x128xf32, #tpu.memory_space<vmem>>, vector<1x1x128xf32>,
    return
  }
  func.func @transform_0(%arg0: i32) -> (i32, i32) {
    %c0_i32 = arith.constant 0 : i32
    %c0_i32_0 = arith.constant 0 : i32
    %c0_i32_1 = arith.constant 0 : i32
    return %c0_i32, %c0_i32_0 : i32, i32
  }
  func.func @transform_1(%arg0: i32) -> (i32, i32) {
    %c0_i32 = arith.constant 0 : i32
    %c0_i32_0 = arith.constant 0 : i32
    %c0_i32_1 = arith.constant 0 : i32
    return %c0_i32, %c0_i32_0 : i32, i32
  }
  func.func @transform_2(%arg0: i32) -> (i32, i32, i32) {
    %c0_i32 = arith.constant 0 : i32
    %c0_i32_0 = arith.constant 0 : i32
    %c0_i32_1 = arith.constant 0 : i32
    return %arg0, %c0_i32, %c0_i32_0 : i32, i32, i32
  }
  func.func @transform_3(%arg0: i32) -> (i32, i32, i32) {
    %c0_i32 = arith.constant 0 : i32
    %c0_i32_0 = arith.constant 0 : i32
    %c0_i32_1 = arith.constant 0 : i32
    return %arg0, %c0_i32, %c0_i32_0 : i32, i32, i32
  }
  func.func @transform_4(%arg0: i32) -> (i32, i32, i32) {
    %c0_i32 = arith.constant 0 : i32
    %c0_i32_0 = arith.constant 0 : i32
    %c0_i32_1 = arith.constant 0 : i32
    return %arg0, %c0_i32, %c0_i32_0 : i32, i32, i32
  }
  func.func @transform_5(%arg0: i32) -> (i32, i32, i32) {
    %c0_i32 = arith.constant 0 : i32
    %c0_i32_0 = arith.constant 0 : i32
    %c0_i32_1 = arith.constant 0 : i32
    return %arg0, %c0_i32, %c0_i32_0 : i32, i32, i32
  }
}

module attributes {stable_mosaic.version = 11 : i64} {
  func.func @kernel(%arg0: i32, %arg1: memref<1x128xf32, #tpu.memory_space<vmem>>, %arg2: memref<1x128xf32, #tpu.memory_space<vmem>>, %arg3: memref<4x16x128xbf16, #tpu.memory_space<vmem>>, %arg4: memref<128x128xbf16, #tpu.memory_space<vmem>>, %arg5: memref<1x128xf32, #tpu.memory_space<vmem>>, %arg6: memref<128x128xbf16, #tpu.memory_space<vmem>>, %arg7: memref<1x128xf32, #tpu.memory_space<vmem>>, %arg8: memref<4x16x128xbf16, #tpu.memory_space<vmem>>, %arg9: memref<1x1x128xf32, #tpu.memory_space<vmem>>, %arg10: memref<1x1x128xf32, #tpu.memory_space<vmem>>) attributes {dimension_semantics = [#tpu.dimension_semantics<parallel>], iteration_bounds = array<i64: 4>, scalar_prefetch = 0 : i64, scratch_operands = 0 : i64, tpu.core_type = #tpu.core_type<tc>, window_params = [{pipeline_mode = #tpu.pipeline_mode<synchronous>, transform_indices = @transform_0, window_bounds = array<i64: 1, 128>}, {pipeline_mode = #tpu.pipeline_mode<synchronous>, transform_indices = @transform_1, window_bounds = array<i64: 1, 128>}, {transform_indices = @transform_2, window_bounds = array<i64: 4, 16, 128>}, {pipeline_mode = #tpu.pipeline_mode<synchronous>, transform_indices = @transform_3, window_bounds = array<i64: 128, 128>}, {pipeline_mode = #tpu.pipeline_mode<synchronous>, transform_indices = @transform_4, window_bounds = array<i64: 1, 128>}, {pipeline_mode = #tpu.pipeline_mode<synchronous>, transform_indices = @transform_5, window_bounds = array<i64: 128, 128>}, {pipeline_mode = #tpu.pipeline_mode<synchronous>, transform_indices = @transform_6, window_bounds = array<i64: 1, 128>}, {transform_indices = @transform_7, window_bounds = array<i64: 4, 16, 128>}, {transform_indices = @transform_8, window_bounds = array<i64: 1, 1, 128>}, {transform_indices = @transform_9, window_bounds = array<i64: 1, 1, 128>}]} {
    %c0 = arith.constant 0 : index
    %c0_0 = arith.constant 0 : index
    %c0_1 = arith.constant 0 : index
    %0 = vector.load %arg3[%c0, %c0_0, %c0_1] : memref<4x16x128xbf16, #tpu.memory_space<vmem>>, vector<4x16x128xbf16>
    %1 = arith.extf %0 : vector<4x16x128xbf16> to vector<4x16x128xf32>
    %c0_2 = arith.constant 0 : index
    %c0_3 = arith.constant 0 : index
    %2 = vector.load %arg1[%c0_2, %c0_3] : memref<1x128xf32, #tpu.memory_space<vmem>>, vector<1x128xf32>
    %3 = vector.shape_cast %2 : vector<1x128xf32> to vector<1x1x128xf32>
    %c0_4 = arith.constant 0 : index
    %c0_5 = arith.constant 0 : index
    %4 = vector.load %arg2[%c0_4, %c0_5] : memref<1x128xf32, #tpu.memory_space<vmem>>, vector<1x128xf32>
    %5 = vector.shape_cast %4 : vector<1x128xf32> to vector<1x1x128xf32>
    %6 = vector.broadcast %3 : vector<1x1x128xf32> to vector<4x16x128xf32>
    %7 = arith.mulf %1, %6 : vector<4x16x128xf32>
    %8 = vector.broadcast %5 : vector<1x1x128xf32> to vector<4x16x128xf32>
    %9 = arith.addf %7, %8 : vector<4x16x128xf32>
    %10 = vector.shape_cast %9 : vector<4x16x128xf32> to vector<64x128xf32>
    %c0_6 = arith.constant 0 : index
    %c0_7 = arith.constant 0 : index
    %11 = vector.load %arg4[%c0_6, %c0_7] : memref<128x128xbf16, #tpu.memory_space<vmem>>, vector<128x128xbf16>
    %c0_8 = arith.constant 0 : index
    %c0_9 = arith.constant 0 : index
    %12 = vector.load %arg5[%c0_8, %c0_9] : memref<1x128xf32, #tpu.memory_space<vmem>>, vector<1x128xf32>
    %13 = arith.truncf %10 : vector<64x128xf32> to vector<64x128xbf16>
    %cst = arith.constant dense<0.000000e+00> : vector<64x128xf32>
    %14 = tpu.matmul %13, %11, %cst {dimension_numbers = #tpu.dot_dimension_numbers<[1], [0], [0], [1], [0, 0, 1, 1], [], []>} : vector<64x128xbf16>, vector<128x128xbf16>, vector<64x128xf32> -> vector<64x128xf32>
    %15 = vector.broadcast %12 : vector<1x128xf32> to vector<64x128xf32>
    %16 = arith.addf %14, %15 : vector<64x128xf32>
    %cst_10 = arith.constant 0.000000e+00 : f32
    %17 = vector.broadcast %cst_10 : f32 to vector<64x128xf32>
    %18 = arith.maximumf %16, %17 : vector<64x128xf32>
    %c0_11 = arith.constant 0 : index
    %c0_12 = arith.constant 0 : index
    %19 = vector.load %arg6[%c0_11, %c0_12] : memref<128x128xbf16, #tpu.memory_space<vmem>>, vector<128x128xbf16>
    %c0_13 = arith.constant 0 : index
    %c0_14 = arith.constant 0 : index
    %20 = vector.load %arg7[%c0_13, %c0_14] : memref<1x128xf32, #tpu.memory_space<vmem>>, vector<1x128xf32>
    %21 = arith.truncf %18 : vector<64x128xf32> to vector<64x128xbf16>
    %cst_15 = arith.constant dense<0.000000e+00> : vector<64x128xf32>
    %22 = tpu.matmul %21, %19, %cst_15 {dimension_numbers = #tpu.dot_dimension_numbers<[1], [0], [0], [1], [0, 0, 1, 1], [], []>} : vector<64x128xbf16>, vector<128x128xbf16>, vector<64x128xf32> -> vector<64x128xf32>
    %23 = vector.broadcast %20 : vector<1x128xf32> to vector<64x128xf32>
    %24 = arith.addf %22, %23 : vector<64x128xf32>
    %cst_16 = arith.constant 0.000000e+00 : f32
    %25 = vector.broadcast %cst_16 : f32 to vector<64x128xf32>
    %26 = arith.maximumf %24, %25 : vector<64x128xf32>
    %27 = arith.addf %26, %10 : vector<64x128xf32>
    %28 = vector.shape_cast %27 : vector<64x128xf32> to vector<4x16x128xf32>
    %29 = arith.truncf %28 : vector<4x16x128xf32> to vector<4x16x128xbf16>
    %c0_17 = arith.constant 0 : index
    %c0_18 = arith.constant 0 : index
    %c0_19 = arith.constant 0 : index
    %30 = vector.load %arg8[%c0_17, %c0_18, %c0_19] : memref<4x16x128xbf16, #tpu.memory_space<vmem>>, vector<4x16x128xbf16>
    tpu.vector_store %arg8[%c0_17, %c0_18, %c0_19], %29 {strides = array<i32>} : memref<4x16x128xbf16, #tpu.memory_space<vmem>>, vector<4x16x128xbf16>,
    %cst_20 = arith.constant dense<0.000000e+00> : vector<128xf32>
    %31 = vector.multi_reduction <add>, %27, %cst_20 [0] : vector<64x128xf32> to vector<128xf32>
    %32 = vector.shape_cast %31 : vector<128xf32> to vector<1x128xf32>
    %33 = vector.shape_cast %32 : vector<1x128xf32> to vector<1x1x128xf32>
    %c0_21 = arith.constant 0 : index
    %c0_22 = arith.constant 0 : index
    %c0_23 = arith.constant 0 : index
    %34 = vector.load %arg9[%c0_21, %c0_22, %c0_23] : memref<1x1x128xf32, #tpu.memory_space<vmem>>, vector<1x1x128xf32>
    tpu.vector_store %arg9[%c0_21, %c0_22, %c0_23], %33 {strides = array<i32>} : memref<1x1x128xf32, #tpu.memory_space<vmem>>, vector<1x1x128xf32>,
    %35 = arith.mulf %27, %27 : vector<64x128xf32>
    %cst_24 = arith.constant dense<0.000000e+00> : vector<128xf32>
    %36 = vector.multi_reduction <add>, %35, %cst_24 [0] : vector<64x128xf32> to vector<128xf32>
    %37 = vector.shape_cast %36 : vector<128xf32> to vector<1x128xf32>
    %38 = vector.shape_cast %37 : vector<1x128xf32> to vector<1x1x128xf32>
    %c0_25 = arith.constant 0 : index
    %c0_26 = arith.constant 0 : index
    %c0_27 = arith.constant 0 : index
    %39 = vector.load %arg10[%c0_25, %c0_26, %c0_27] : memref<1x1x128xf32, #tpu.memory_space<vmem>>, vector<1x1x128xf32>
    tpu.vector_store %arg10[%c0_25, %c0_26, %c0_27], %38 {strides = array<i32>} : memref<1x1x128xf32, #tpu.memory_space<vmem>>, vector<1x1x128xf32>,
    return
  }
  func.func @transform_0(%arg0: i32) -> (i32, i32) {
    %c0_i32 = arith.constant 0 : i32
    %c0_i32_0 = arith.constant 0 : i32
    %c0_i32_1 = arith.constant 0 : i32
    return %c0_i32, %c0_i32_0 : i32, i32
  }
  func.func @transform_1(%arg0: i32) -> (i32, i32) {
    %c0_i32 = arith.constant 0 : i32
    %c0_i32_0 = arith.constant 0 : i32
    %c0_i32_1 = arith.constant 0 : i32
    return %c0_i32, %c0_i32_0 : i32, i32
  }
  func.func @transform_2(%arg0: i32) -> (i32, i32, i32) {
    %c0_i32 = arith.constant 0 : i32
    %c0_i32_0 = arith.constant 0 : i32
    %c0_i32_1 = arith.constant 0 : i32
    return %arg0, %c0_i32, %c0_i32_0 : i32, i32, i32
  }
  func.func @transform_3(%arg0: i32) -> (i32, i32) {
    %c0_i32 = arith.constant 0 : i32
    %c0_i32_0 = arith.constant 0 : i32
    %c0_i32_1 = arith.constant 0 : i32
    return %c0_i32, %c0_i32_0 : i32, i32
  }
  func.func @transform_4(%arg0: i32) -> (i32, i32) {
    %c0_i32 = arith.constant 0 : i32
    %c0_i32_0 = arith.constant 0 : i32
    %c0_i32_1 = arith.constant 0 : i32
    return %c0_i32, %c0_i32_0 : i32, i32
  }
  func.func @transform_5(%arg0: i32) -> (i32, i32) {
    %c0_i32 = arith.constant 0 : i32
    %c0_i32_0 = arith.constant 0 : i32
    %c0_i32_1 = arith.constant 0 : i32
    return %c0_i32, %c0_i32_0 : i32, i32
  }
  func.func @transform_6(%arg0: i32) -> (i32, i32) {
    %c0_i32 = arith.constant 0 : i32
    %c0_i32_0 = arith.constant 0 : i32
    %c0_i32_1 = arith.constant 0 : i32
    return %c0_i32, %c0_i32_0 : i32, i32
  }
  func.func @transform_7(%arg0: i32) -> (i32, i32, i32) {
    %c0_i32 = arith.constant 0 : i32
    %c0_i32_0 = arith.constant 0 : i32
    %c0_i32_1 = arith.constant 0 : i32
    return %arg0, %c0_i32, %c0_i32_0 : i32, i32, i32
  }
  func.func @transform_8(%arg0: i32) -> (i32, i32, i32) {
    %c0_i32 = arith.constant 0 : i32
    %c0_i32_0 = arith.constant 0 : i32
    %c0_i32_1 = arith.constant 0 : i32
    return %arg0, %c0_i32, %c0_i32_0 : i32, i32, i32
  }
  func.func @transform_9(%arg0: i32) -> (i32, i32, i32) {
    %c0_i32 = arith.constant 0 : i32
    %c0_i32_0 = arith.constant 0 : i32
    %c0_i32_1 = arith.constant 0 : i32
    return %arg0, %c0_i32, %c0_i32_0 : i32, i32, i32
  }
}

</mosaic_0001>

<llo_original>
// kernel: _lambda_.4
$region0: #{_lambda_.4}
  #allocation0 [shape = 'u32[]', space=smem, size = 0x4, offset = 0x4, fixed_abs, tag = 'smem constant byte address 0x4 - core index']
  #allocation1 [shape = 'u32[144,128]{1,0:T(1,128)}', space=vmem, size = 0x12000, scoped, tag = 'internal scratch']
  %s0 = inlined_call_operand.vmem [shape: f32[1,128], index: 0, kind: input, shape index: {}]
  %s1 = inlined_call_operand.vmem [shape: f32[1,128], index: 1, kind: input, shape index: {}]
  %s2 = inlined_call_operand.vmem [shape: f32[16,16,128], index: 2, kind: input, shape index: {}]
  %s3 = inlined_call_operand.vmem [shape: bf16[16,16,128], index: 3, kind: output, shape index: {0}]
  %s4 = inlined_call_operand.vmem [shape: f32[4,1,128], index: 4, kind: output, shape index: {1}]
  %s5 = inlined_call_operand.vmem [shape: f32[4,1,128], index: 5, kind: output, shape index: {2}]
  %6 = xla_tuple %s3, %s4, %s5
  %s7 = sld [smem:[#allocation0]]
  $region61: #{_lambda_.4} parent=0
    _
  %s9 = ssub.s32 1, %s7
  %s10 = scalar_select 0, %s9, %s7
  loop: start=0, step=1, limit=6
  $region2: #{_lambda_.4} parent=0 // loop_pre_header
    _
  $region3: #{_lambda_.4} parent=0 // loop_header
    %s12 = sphi 0, %s16
    %p13 = scmp.ge.s32.totalorder %s12, 6
    %s20 = sphi 0, %s20
    %s22 = sphi 0, %s20
    %s23 = sphi 0, %s22
    %s37 = sphi 0, %s23
    %s41 = sphi 0, %s41
    %s43 = sphi 0, %s41
    %s44 = sphi 0, %s43
    %s58 = sphi 0, %s44
    %s64 = sphi 0, %s66
    %s67 = sphi 0, %s64
    %s68 = sphi 0, %s67
    %s84 = sphi 0, %s68
    %s90 = sphi 0, %s92
    %s93 = sphi 0, %s90
    %s94 = sphi 0, %s93
    %s110 = sphi 0, %s94
    %s116 = sphi 0, %s118
    %s119 = sphi 0, %s116
    %s120 = sphi 0, %s119
    %s136 = sphi 0, %s120
    %s142 = sphi 0, %s144
    %s145 = sphi 0, %s142
    %s146 = sphi 0, %s145
    %s162 = sphi 0, %s146
  $region4: #{_lambda_.4} parent=0 // loop_header_branch
    %15 = sbr.rel (%p13) target = $region8
  $region5: #{_lambda_.4} parent=0 // loop_body
    %s17 = ssub.s32 %s12, 1
    %s18 = ssub.s32 %s12, 2
    %s19 = sadd.s32 %s12, 1
    %s21 = sadd.s32 %s20, 1
    %p24 = scmp.eq.s32.totalorder %s12, 3
    %p25 = scmp.ne.s32.totalorder %s20, %s22
    %p26 = scmp.eq.s32.totalorder %s12, 0
    %p27 = por %p25, %p26
    %p28 = scmp.ne.s32.totalorder %s20, %s22
    %p29 = scmp.eq.s32.totalorder %s17, 3
    %p30 = por %p28, %p29
    %p31 = scmp.ne.s32.totalorder %s22, %s23
    %p32 = scmp.eq.s32.totalorder %s17, 0
    %p33 = por %p31, %p32
    %p34 = scmp.ne.s32.totalorder %s22, %s23
    %p35 = scmp.eq.s32.totalorder %s18, 3
    %p36 = por %p34, %p35
    %p38 = scmp.ne.s32.totalorder %s23, %s37
    %p39 = scmp.eq.s32.totalorder %s18, 0
    %p40 = por %p38, %p39
    %s42 = sadd.s32 %s41, 1
    %p45 = scmp.eq.s32.totalorder %s12, 3
    %p46 = scmp.ne.s32.totalorder %s41, %s43
    %p47 = scmp.eq.s32.totalorder %s12, 0
    %p48 = por %p46, %p47
    %p49 = scmp.ne.s32.totalorder %s41, %s43
    %p50 = scmp.eq.s32.totalorder %s17, 3
    %p51 = por %p49, %p50
    %p52 = scmp.ne.s32.totalorder %s43, %s44
    %p53 = scmp.eq.s32.totalorder %s17, 0
    %p54 = por %p52, %p53
    %p55 = scmp.ne.s32.totalorder %s43, %s44
    %p56 = scmp.eq.s32.totalorder %s18, 3
    %p57 = por %p55, %p56
    %p59 = scmp.ne.s32.totalorder %s44, %s58
    %p60 = scmp.eq.s32.totalorder %s18, 0
    %p61 = por %p59, %p60
    %s62 = ssub.s32 %s12, %s19
    %p63 = scmp.eq.s32.totalorder %s62, 0
    %s65 = sadd.s32 %s64, 1
    %s66 = scalar_select %p63, %s64, %s65
    %p69 = pneg %p63
    %p70 = scmp.eq.s32.totalorder %s12, 3
    %p71 = por %p69, %p70
    %p72 = scmp.ne.s32.totalorder %s64, %s67
    %p73 = scmp.eq.s32.totalorder %s12, 0
    %p74 = por %p72, %p73
    %p75 = scmp.ne.s32.totalorder %s64, %s67
    %p76 = scmp.eq.s32.totalorder %s17, 3
    %p77 = por %p75, %p76
    %p78 = scmp.ne.s32.totalorder %s67, %s68
    %p79 = scmp.eq.s32.totalorder %s17, 0
    %p80 = por %p78, %p79
    %p81 = scmp.ne.s32.totalorder %s67, %s68
    %p82 = scmp.eq.s32.totalorder %s18, 3
    %p83 = por %p81, %p82
    %p85 = scmp.ne.s32.totalorder %s68, %s84
    %p86 = scmp.eq.s32.totalorder %s18, 0
    %p87 = por %p85, %p86
    %s88 = ssub.s32 %s12, %s19
    %p89 = scmp.eq.s32.totalorder %s88, 0
    %s91 = sadd.s32 %s90, 1
    %s92 = scalar_select %p89, %s90, %s91
    %p95 = pneg %p89
    %p96 = scmp.eq.s32.totalorder %s12, 3
    %p97 = por %p95, %p96
    %p98 = scmp.ne.s32.totalorder %s90, %s93
    %p99 = scmp.eq.s32.totalorder %s12, 0
    %p100 = por %p98, %p99
    %p101 = scmp.ne.s32.totalorder %s90, %s93
    %p102 = scmp.eq.s32.totalorder %s17, 3
    %p103 = por %p101, %p102
    %p104 = scmp.ne.s32.totalorder %s93, %s94
    %p105 = scmp.eq.s32.totalorder %s17, 0
    %p106 = por %p104, %p105
    %p107 = scmp.ne.s32.totalorder %s93, %s94
    %p108 = scmp.eq.s32.totalorder %s18, 3
    %p109 = por %p107, %p108
    %p111 = scmp.ne.s32.totalorder %s94, %s110
    %p112 = scmp.eq.s32.totalorder %s18, 0
    %p113 = por %p111, %p112
    %s114 = ssub.s32 %s12, %s19
    %p115 = scmp.eq.s32.totalorder %s114, 0
    %s117 = sadd.s32 %s116, 1
    %s118 = scalar_select %p115, %s116, %s117
    %p121 = pneg %p115
    %p122 = scmp.eq.s32.totalorder %s12, 3
    %p123 = por %p121, %p122
    %p124 = scmp.ne.s32.totalorder %s116, %s119
    %p125 = scmp.eq.s32.totalorder %s12, 0
    %p126 = por %p124, %p125
    %p127 = scmp.ne.s32.totalorder %s116, %s119
    %p128 = scmp.eq.s32.totalorder %s17, 3
    %p129 = por %p127, %p128
    %p130 = scmp.ne.s32.totalorder %s119, %s120
    %p131 = scmp.eq.s32.totalorder %s17, 0
    %p132 = por %p130, %p131
    %p133 = scmp.ne.s32.totalorder %s119, %s120
    %p134 = scmp.eq.s32.totalorder %s18, 3
    %p135 = por %p133, %p134
    %p137 = scmp.ne.s32.totalorder %s120, %s136
    %p138 = scmp.eq.s32.totalorder %s18, 0
    %p139 = por %p137, %p138
    %s140 = ssub.s32 %s12, %s19
    %p141 = scmp.eq.s32.totalorder %s140, 0
    %s143 = sadd.s32 %s142, 1
    %s144 = scalar_select %p141, %s142, %s143
    %p147 = pneg %p141
    %p148 = scmp.eq.s32.totalorder %s12, 3
    %p149 = por %p147, %p148
    %p150 = scmp.ne.s32.totalorder %s142, %s145
    %p151 = scmp.eq.s32.totalorder %s12, 0
    %p152 = por %p150, %p151
    %p153 = scmp.ne.s32.totalorder %s142, %s145
    %p154 = scmp.eq.s32.totalorder %s17, 3
    %p155 = por %p153, %p154
    %p156 = scmp.ne.s32.totalorder %s145, %s146
    %p157 = scmp.eq.s32.totalorder %s17, 0
    %p158 = por %p156, %p157
    %p159 = scmp.ne.s32.totalorder %s145, %s146
    %p160 = scmp.eq.s32.totalorder %s18, 3
    %p161 = por %p159, %p160
    %p163 = scmp.ne.s32.totalorder %s146, %s162
    %p164 = scmp.eq.s32.totalorder %s18, 0
    %p165 = por %p163, %p164
    %p166 = scmp.le.s32.totalorder 1, %s12
    %p167 = scmp.lt.s32.totalorder %s12, 5
    %p168 = pnand %p166, %p167
    %p169 = pneg %p168
    // Predicated region
    $region9: #{_lambda_.4} parent=5 // pred_check
      _
    $region10: #{_lambda_.4} parent=5 // pred_check_branch
      %171 = sbr.rel (%p168) target = $region12
    $region11: #{_lambda_.4} parent=5 // pred_region
      %s172 = ssub.s32 %s12, 1
      // Predicated region
      $region13: #{_lambda_.4} parent=11 // pred_check
        %p173 = pneg %p33
      $region14: #{_lambda_.4} parent=11 // pred_check_branch
        %175 = sbr.rel (%p173) target = $region16
      $region15: #{_lambda_.4} parent=11 // pred_region
        _
      $region16: #{_lambda_.4} parent=11 // pred_fallthru
        _
      // Predicated region
      $region17: #{_lambda_.4} parent=11 // pred_check
        %p176 = pneg %p54
      $region18: #{_lambda_.4} parent=11 // pred_check_branch
        %178 = sbr.rel (%p176) target = $region20
      $region19: #{_lambda_.4} parent=11 // pred_region
        _
      $region20: #{_lambda_.4} parent=11 // pred_fallthru
        _
    $region12: #{_lambda_.4} parent=5 // pred_fallthru
      _
    %p179 = scmp.lt.s32.totalorder %s12, 4
    // Predicated region
    $region21: #{_lambda_.4} parent=5 // pred_check
      %p180 = pneg %p179
    $region22: #{_lambda_.4} parent=5 // pred_check_branch
      %182 = sbr.rel (%p180) target = $region24
    $region23: #{_lambda_.4} parent=5 // pred_region
      // Predicated region
      $region25: #{_lambda_.4} parent=23 // pred_check
        %p183 = pneg %p74
      $region26: #{_lambda_.4} parent=23 // pred_check_branch
        %185 = sbr.rel (%p183) target = $region28
      $region27: #{_lambda_.4} parent=23 // pred_region
        %s186 = smul.u32 4, %s12
        %p187 = scmp.lt.s32.totalorder %s186, 15
        %s188 = scalar_select %p187, %s186, 15
        %s189 = smul.addr %s188, 2
        %s190 = smul.addr %s189, 8
        %s191 = scalar_lea.vmem %s2, %s190
        %s192 = smul.u32 4, %s12
      $region28: #{_lambda_.4} parent=23 // pred_fallthru
        _
    $region24: #{_lambda_.4} parent=5 // pred_fallthru
      _
    %p193 = scmp.le.s32.totalorder 1, %s12
    %p194 = scmp.lt.s32.totalorder %s12, 5
    %p195 = pnand %p193, %p194
    %p196 = pneg %p195
    // Predicated region
    $region29: #{_lambda_.4} parent=5 // pred_check
      _
    $region30: #{_lambda_.4} parent=5 // pred_check_branch
      %198 = sbr.rel (%p195) target = $region32
    $region31: #{_lambda_.4} parent=5 // pred_region
      %s199 = ssub.s32 %s12, 1
      %p200 = pneg %p33
      %p201 = pneg %p30
      %p202 = pneg %p54
      %p203 = pneg %p51
      %s204 = smul.u32 4, %s17
      %p205 = scmp.lt.s32.totalorder %s204, 15
      %s206 = scalar_select %p205, %s204, 15
      %s207 = smul.addr %s206, 2
      %s208 = smul.addr %s207, 8
      %s209 = scalar_lea.vmem %s2, %s208
      %p210 = pneg %p80
      %p211 = pneg %p77
      %p212 = pneg %p106
      %p213 = pneg %p103
      %s214 = smul.u32 4, %s17
      %p215 = scmp.lt.s32.totalorder %s214, 15
      %s216 = scalar_select %p215, %s214, 15
      %s217 = smul.addr %s216, 2
      %s218 = smul.addr %s217, 4
      %s219 = scalar_lea.vmem %s3, %s218
      %p220 = pneg %p132
      %p221 = pneg %p129
      %p222 = scmp.lt.s32.totalorder %s17, 3
      %s223 = scalar_select %p222, %s17, 3
      %s224 = scalar_lea.vmem %s4, %s223
      %p225 = pneg %p158
      %p226 = pneg %p155
      %p227 = scmp.lt.s32.totalorder %s17, 3
      %s228 = scalar_select %p227, %s17, 3
      %s229 = scalar_lea.vmem %s5, %s228
      %s230 = smul.u32 4, %s17
      %p231 = scmp.lt.s32.totalorder %s230, 15
      %s232 = scalar_select %p231, %s230, 15
      %s233 = smul.addr %s232, 2
      %s234 = smul.addr %s233, 8
      %s235 = scalar_lea.vmem %s2, %s234
      %s236 = smul.u32 4, %s17
      %s237 = smul.u32 4, %s17
      %p238 = scmp.lt.s32.totalorder %s237, 15
      %s239 = scalar_select %p238, %s237, 15
      %s240 = smul.addr %s239, 2
      %s241 = smul.addr %s240, 4
      %s242 = scalar_lea.vmem %s3, %s241
      %s243 = smul.u32 4, %s17
      %p244 = scmp.lt.s32.totalorder %s17, 3
      %s245 = scalar_select %p244, %s17, 3
      %s246 = scalar_lea.vmem %s4, %s245
      %p247 = scmp.lt.s32.totalorder %s17, 3
      %s248 = scalar_select %p247, %s17, 3
      %s249 = scalar_lea.vmem %s5, %s248
      %v251 = vld [vmem:[%s235] sm:$0xff]
      %v252 = vld [vmem:[%s235 + $0x8] sm:$0xff]
      %v253 = vld [vmem:[%s235 + $0x10] sm:$0xff]
      %v254 = vld [vmem:[%s235 + $0x18] sm:$0xff]
      %v255 = vld [vmem:[%s235 + $0x20] sm:$0xff]
      %v256 = vld [vmem:[%s235 + $0x28] sm:$0xff]
      %v257 = vld [vmem:[%s235 + $0x30] sm:$0xff]
      %v258 = vld [vmem:[%s235 + $0x38] sm:$0xff]
      %v259 = vld [vmem:[%s0] sm:$0x1]
      %v260 = vld [vmem:[%s1] sm:$0x1]
      %v262 = vlaneseq
      %v263 = vshrl.u32 %v262, 7
      %v264 = vsub.s32 0, %v263
      %v265 = vrot.slane %v259, %v264
      %v267 = vmul.f32 %v251, %v265
      %v268 = vmul.f32 %v252, %v265
      %v269 = vmul.f32 %v253, %v265
      %v270 = vmul.f32 %v254, %v265
      %v271 = vmul.f32 %v255, %v265
      %v272 = vmul.f32 %v256, %v265
      %v273 = vmul.f32 %v257, %v265
      %v274 = vmul.f32 %v258, %v265
      %v276 = vlaneseq
      %v277 = vshrl.u32 %v276, 7
      %v278 = vsub.s32 0, %v277
      %v279 = vrot.slane %v260, %v278
      %v281 = vadd.f32 %v267, %v279
      %v282 = vadd.f32 %v268, %v279
      %v283 = vadd.f32 %v269, %v279
      %v284 = vadd.f32 %v270, %v279
      %v285 = vadd.f32 %v271, %v279
      %v286 = vadd.f32 %v272, %v279
      %v287 = vadd.f32 %v273, %v279
      %v288 = vadd.f32 %v274, %v279
      %v289 = vmul.f32 %v281, 0.17677669
      %v290 = vmul.f32 %v282, 0.17677669
      %v291 = vmul.f32 %v283, 0.17677669
      %v292 = vmul.f32 %v284, 0.17677669
      %v293 = vmul.f32 %v285, 0.17677669
      %v294 = vmul.f32 %v286, 0.17677669
      %v295 = vmul.f32 %v287, 0.17677669
      %v296 = vmul.f32 %v288, 0.17677669
      %v297 = vpack.c.bf16 %v290, %v289
      %v298 = vpack.c.bf16 %v292, %v291
      %v299 = vpack.c.bf16 %v294, %v293
      %v300 = vpack.c.bf16 %v296, %v295
      %v301 = vpack.c.bf16 %v282, %v281
      %v302 = vpack.c.bf16 %v284, %v283
      %v303 = vpack.c.bf16 %v286, %v285
      %v304 = vpack.c.bf16 %v288, %v287
      %305 = vmatprep.subr.bf16.mxu0 0
      %306 = vmatpush1.bf16.xpose.msra.mxu0 %v301
      %307 = vmatprep.subr.bf16.mxu0 0
      %308 = vmatpush1.bf16.xpose.msra.mxu0 0
      %309 = vmatprep.subr.bf16.mxu0 0
      %310 = vmatpush1.bf16.xpose.msra.mxu0 0
      %311 = vmatprep.subr.bf16.mxu0 0
      %312 = vmatpush1.bf16.xpose.msra.mxu0 0
      %313 = vmatprep.subr.bf16.mxu0 0
      %314 = vmatpush1.bf16.xpose.msra.mxu0 0
      %315 = vmatprep.subr.bf16.mxu0 0
      %316 = vmatpush1.bf16.xpose.msra.mxu0 0
      %317 = vmatprep.subr.bf16.mxu0 0
      %318 = vmatpush1.bf16.xpose.msra.mxu0 0
      %319 = vmatprep.subr.bf16.mxu0 0
      %320 = vmatpush1.bf16.xpose.msra.mxu0 0
      %321 = vmatprep.subr.bf16.mxu0 0
      %322 = vmatpush1.bf16.xpose.msra.mxu0 0
      %323 = vmatprep.subr.bf16.mxu0 0
      %324 = vmatpush1.bf16.xpose.msra.mxu0 0
      %325 = vmatprep.subr.bf16.mxu0 0
      %326 = vmatpush1.bf16.xpose.msra.mxu0 0
      %327 = vmatprep.subr.bf16.mxu0 0
      %328 = vmatpush1.bf16.xpose.msra.mxu0 0
      %329 = vmatprep.subr.bf16.mxu0 0
      %330 = vmatpush1.bf16.xpose.msra.mxu0 0
      %331 = vmatprep.subr.bf16.mxu0 0
      %332 = vmatpush1.bf16.xpose.msra.mxu0 0
      %333 = vmatprep.subr.bf16.mxu0 0
      %334 = vmatpush1.bf16.xpose.msra.mxu0 0
      %335 = vmatprep.subr.bf16.mxu0 0
      %336 = vmatpush1.bf16.xpose.msra.mxu0 0
      %337 = vmatprep.mubr.bf16.mxu0 0
      %338 = vmatmul.mubr.bf16.gmra.mrb[0].mxu0 %v297
      %v339 = vpop.f32.mrb[0].mxu0
      %v340 = vadd.f32 0.0, %v339
      %v341 = vpop.f32.mrb[0].mxu0
      %v342 = vpop.f32.mrb[0].mxu0
      %v343 = vadd.f32 0.0, %v342
      %v344 = vpop.f32.mrb[0].mxu0
      %345 = vdwg.mxu0
      %346 = vmatprep.subr.bf16.mxu0 0
      %347 = vmatpush1.bf16.xpose.msra.mxu0 %v302
      %348 = vmatprep.subr.bf16.mxu0 0
      %349 = vmatpush1.bf16.xpose.msra.mxu0 0
      %350 = vmatprep.subr.bf16.mxu0 0
      %351 = vmatpush1.bf16.xpose.msra.mxu0 0
      %352 = vmatprep.subr.bf16.mxu0 0
      %353 = vmatpush1.bf16.xpose.msra.mxu0 0
      %354 = vmatprep.subr.bf16.mxu0 0
      %355 = vmatpush1.bf16.xpose.msra.mxu0 0
      %356 = vmatprep.subr.bf16.mxu0 0
      %357 = vmatpush1.bf16.xpose.msra.mxu0 0
      %358 = vmatprep.subr.bf16.mxu0 0
      %359 = vmatpush1.bf16.xpose.msra.mxu0 0
      %360 = vmatprep.subr.bf16.mxu0 0
      %361 = vmatpush1.bf16.xpose.msra.mxu0 0
      %362 = vmatprep.subr.bf16.mxu0 0
      %363 = vmatpush1.bf16.xpose.msra.mxu0 0
      %364 = vmatprep.subr.bf16.mxu0 0
      %365 = vmatpush1.bf16.xpose.msra.mxu0 0
      %366 = vmatprep.subr.bf16.mxu0 0
      %367 = vmatpush1.bf16.xpose.msra.mxu0 0
      %368 = vmatprep.subr.bf16.mxu0 0
      %369 = vmatpush1.bf16.xpose.msra.mxu0 0
      %370 = vmatprep.subr.bf16.mxu0 0
      %371 = vmatpush1.bf16.xpose.msra.mxu0 0
      %372 = vmatprep.subr.bf16.mxu0 0
      %373 = vmatpush1.bf16.xpose.msra.mxu0 0
      %374 = vmatprep.subr.bf16.mxu0 0
      %375 = vmatpush1.bf16.xpose.msra.mxu0 0
      %376 = vmatprep.subr.bf16.mxu0 0
      %377 = vmatpush1.bf16.xpose.msra.mxu0 0
      %378 = vmatprep.mubr.bf16.mxu0 0
      %379 = vmatmul.mubr.bf16.gmra.mrb[0].mxu0 %v298
      %v380 = vpop.f32.mrb[0].mxu0
      %v381 = vadd.f32 0.0, %v380
      %v382 = vpop.f32.mrb[0].mxu0
      %v383 = vpop.f32.mrb[0].mxu0
      %v384 = vadd.f32 0.0, %v383
      %v385 = vpop.f32.mrb[0].mxu0
      %386 = vdwg.mxu0
      %387 = vmatprep.subr.bf16.mxu0 0
      %388 = vmatpush1.bf16.xpose.msra.mxu0 %v303
      %389 = vmatprep.subr.bf16.mxu0 0
      %390 = vmatpush1.bf16.xpose.msra.mxu0 0
      %391 = vmatprep.subr.bf16.mxu0 0
      %392 = vmatpush1.bf16.xpose.msra.mxu0 0
      %393 = vmatprep.subr.bf16.mxu0 0
      %394 = vmatpush1.bf16.xpose.msra.mxu0 0
      %395 = vmatprep.subr.bf16.mxu0 0
      %396 = vmatpush1.bf16.xpose.msra.mxu0 0
      %397 = vmatprep.subr.bf16.mxu0 0
      %398 = vmatpush1.bf16.xpose.msra.mxu0 0
      %399 = vmatprep.subr.bf16.mxu0 0
      %400 = vmatpush1.bf16.xpose.msra.mxu0 0
      %401 = vmatprep.subr.bf16.mxu0 0
      %402 = vmatpush1.bf16.xpose.msra.mxu0 0
      %403 = vmatprep.subr.bf16.mxu0 0
      %404 = vmatpush1.bf16.xpose.msra.mxu0 0
      %405 = vmatprep.subr.bf16.mxu0 0
      %406 = vmatpush1.bf16.xpose.msra.mxu0 0
      %407 = vmatprep.subr.bf16.mxu0 0
      %408 = vmatpush1.bf16.xpose.msra.mxu0 0
      %409 = vmatprep.subr.bf16.mxu0 0
      %410 = vmatpush1.bf16.xpose.msra.mxu0 0
      %411 = vmatprep.subr.bf16.mxu0 0
      %412 = vmatpush1.bf16.xpose.msra.mxu0 0
      %413 = vmatprep.subr.bf16.mxu0 0
      %414 = vmatpush1.bf16.xpose.msra.mxu0 0
      %415 = vmatprep.subr.bf16.mxu0 0
      %416 = vmatpush1.bf16.xpose.msra.mxu0 0
      %417 = vmatprep.subr.bf16.mxu0 0
      %418 = vmatpush1.bf16.xpose.msra.mxu0 0
      %419 = vmatprep.mubr.bf16.mxu0 0
      %420 = vmatmul.mubr.bf16.gmra.mrb[0].mxu0 %v299
      %v421 = vpop.f32.mrb[0].mxu0
      %v422 = vadd.f32 0.0, %v421
      %v423 = vpop.f32.mrb[0].mxu0
      %v424 = vpop.f32.mrb[0].mxu0
      %v425 = vadd.f32 0.0, %v424
      %v426 = vpop.f32.mrb[0].mxu0
      %427 = vdwg.mxu0
      %428 = vmatprep.subr.bf16.mxu0 0
      %429 = vmatpush1.bf16.xpose.msra.mxu0 %v304
      %430 = vmatprep.subr.bf16.mxu0 0
      %431 = vmatpush1.bf16.xpose.msra.mxu0 0
      %432 = vmatprep.subr.bf16.mxu0 0
      %433 = vmatpush1.bf16.xpose.msra.mxu0 0
      %434 = vmatprep.subr.bf16.mxu0 0
      %435 = vmatpush1.bf16.xpose.msra.mxu0 0
      %436 = vmatprep.subr.bf16.mxu0 0
      %437 = vmatpush1.bf16.xpose.msra.mxu0 0
      %438 = vmatprep.subr.bf16.mxu0 0
      %439 = vmatpush1.bf16.xpose.msra.mxu0 0
      %440 = vmatprep.subr.bf16.mxu0 0
      %441 = vmatpush1.bf16.xpose.msra.mxu0 0
      %442 = vmatprep.subr.bf16.mxu0 0
      %443 = vmatpush1.bf16.xpose.msra.mxu0 0
      %444 = vmatprep.subr.bf16.mxu0 0
      %445 = vmatpush1.bf16.xpose.msra.mxu0 0
      %446 = vmatprep.subr.bf16.mxu0 0
      %447 = vmatpush1.bf16.xpose.msra.mxu0 0
      %448 = vmatprep.subr.bf16.mxu0 0
      %449 = vmatpush1.bf16.xpose.msra.mxu0 0
      %450 = vmatprep.subr.bf16.mxu0 0
      %451 = vmatpush1.bf16.xpose.msra.mxu0 0
      %452 = vmatprep.subr.bf16.mxu0 0
      %453 = vmatpush1.bf16.xpose.msra.mxu0 0
      %454 = vmatprep.subr.bf16.mxu0 0
      %455 = vmatpush1.bf16.xpose.msra.mxu0 0
      %456 = vmatprep.subr.bf16.mxu0 0
      %457 = vmatpush1.bf16.xpose.msra.mxu0 0
      %458 = vmatprep.subr.bf16.mxu0 0
      %459 = vmatpush1.bf16.xpose.msra.mxu0 0
      %460 = vmatprep.mubr.bf16.mxu0 0
      %461 = vmatmul.mubr.bf16.gmra.mrb[0].mxu0 %v300
      %v462 = vpop.f32.mrb[0].mxu0
      %v463 = vadd.f32 0.0, %v462
      %v464 = vpop.f32.mrb[0].mxu0
      %v465 = vpop.f32.mrb[0].mxu0
      %v466 = vadd.f32 0.0, %v465
      %v467 = vpop.f32.mrb[0].mxu0
      %468 = vdwg.mxu0
      %vm469 = vcmask 130048
      %v470 = vsel %vm469, %v340, -inf
      %v471 = vsel %vm469, %v343, -inf
      %v472 = vmax.f32 %v470, %v471
      %v473 = vrot.slane %v472, 4
      %v474 = vmax.f32 %v472, %v473
      %v475 = vrot.slane %v474, 2
      %v476 = vmax.f32 %v474, %v475
      %v477 = vrot.slane %v476, 1
      %v478 = vmax.f32 %v476, %v477
      %v479 = vsel %vm469, %v381, -inf
      %v480 = vsel %vm469, %v384, -inf
      %v481 = vmax.f32 %v479, %v480
      %v482 = vrot.slane %v481, 4
      %v483 = vmax.f32 %v481, %v482
      %v484 = vrot.slane %v483, 2
      %v485 = vmax.f32 %v483, %v484
      %v486 = vrot.slane %v485, 1
      %v487 = vmax.f32 %v485, %v486
      %v488 = vsel %vm469, %v422, -inf
      %v489 = vsel %vm469, %v425, -inf
      %v490 = vmax.f32 %v488, %v489
      %v491 = vrot.slane %v490, 4
      %v492 = vmax.f32 %v490, %v491
      %v493 = vrot.slane %v492, 2
      %v494 = vmax.f32 %v492, %v493
      %v495 = vrot.slane %v494, 1
      %v496 = vmax.f32 %v494, %v495
      %v497 = vsel %vm469, %v463, -inf
      %v498 = vsel %vm469, %v466, -inf
      %v499 = vmax.f32 %v497, %v498
      %v500 = vrot.slane %v499, 4
      %v501 = vmax.f32 %v499, %v500
      %v502 = vrot.slane %v501, 2
      %v503 = vmax.f32 %v501, %v502
      %v504 = vrot.slane %v503, 1
      %v505 = vmax.f32 %v503, %v504
      %v506 = vsub.f32 %v340, %v478
      %v507 = vsub.f32 %v343, %v478
      %v508 = vsub.f32 %v381, %v487
      %v509 = vsub.f32 %v384, %v487
      %v510 = vsub.f32 %v422, %v496
      %v511 = vsub.f32 %v425, %v496
      %v512 = vsub.f32 %v463, %v505
      %v513 = vsub.f32 %v466, %v505
      %v514 = vmul.f32 %v506, 1.442695
      %v515 = vpow.pop %v514
      %v516 = vmul.f32 %v507, 1.442695
      %v517 = vpow.pop %v516
      %v518 = vmul.f32 %v508, 1.442695
      %v519 = vpow.pop %v518
      %v520 = vmul.f32 %v509, 1.442695
      %v521 = vpow.pop %v520
      %v522 = vmul.f32 %v510, 1.442695
      %v523 = vpow.pop %v522
      %v524 = vmul.f32 %v511, 1.442695
      %v525 = vpow.pop %v524
      %v526 = vmul.f32 %v512, 1.442695
      %v527 = vpow.pop %v526
      %v528 = vmul.f32 %v513, 1.442695
      %v529 = vpow.pop %v528
      %v530 = vsel %vm469, %v515, 0.0
      %v531 = vsel %vm469, %v517, 0.0
      %v532 = vadd.f32 %v530, %v531
      %v533 = vrot.slane %v532, 4
      %v534 = vadd.f32 %v532, %v533
      %v535 = vrot.slane %v534, 2
      %v536 = vadd.f32 %v534, %v535
      %v537 = vrot.slane %v536, 1
      %v538 = vadd.f32 %v536, %v537
      %v539 = vsel %vm469, %v519, 0.0
      %v540 = vsel %vm469, %v521, 0.0
      %v541 = vadd.f32 %v539, %v540
      %v542 = vrot.slane %v541, 4
      %v543 = vadd.f32 %v541, %v542
      %v544 = vrot.slane %v543, 2
      %v545 = vadd.f32 %v543, %v544
      %v546 = vrot.slane %v545, 1
      %v547 = vadd.f32 %v545, %v546
      %v548 = vsel %vm469, %v523, 0.0
      %v549 = vsel %vm469, %v525, 0.0
      %v550 = vadd.f32 %v548, %v549
      %v551 = vrot.slane %v550, 4
      %v552 = vadd.f32 %v550, %v551
      %v553 = vrot.slane %v552, 2
      %v554 = vadd.f32 %v552, %v553
      %v555 = vrot.slane %v554, 1
      %v556 = vadd.f32 %v554, %v555
      %v557 = vsel %vm469, %v527, 0.0
      %v558 = vsel %vm469, %v529, 0.0
      %v559 = vadd.f32 %v557, %v558
      %v560 = vrot.slane %v559, 4
      %v561 = vadd.f32 %v559, %v560
      %v562 = vrot.slane %v561, 2
      %v563 = vadd.f32 %v561, %v562
      %v564 = vrot.slane %v563, 1
      %v565 = vadd.f32 %v563, %v564
      %v566 = vrcp.pop %v538
      %v567 = vrcp.pop %v547
      %v568 = vrcp.pop %v556
      %v569 = vrcp.pop %v565
      %v570 = vmul.f32 %v515, %v566
      %v571 = vmul.f32 %v517, %v566
      %v572 = vmul.f32 %v519, %v567
      %v573 = vmul.f32 %v521, %v567
      %v574 = vmul.f32 %v523, %v568
      %v575 = vmul.f32 %v525, %v568
      %v576 = vmul.f32 %v527, %v569
      %v577 = vmul.f32 %v529, %v569
      %v578 = vpack.c.bf16 %v571, %v570
      %v579 = vpack.c.bf16 %v573, %v572
      %v580 = vpack.c.bf16 %v575, %v574
      %v581 = vpack.c.bf16 %v577, %v576
      %v583 = vsel %vm469, %v578, 0
      %585 = vmatprep.subr.bf16.mxu0 0
      %586 = vmatpush1.bf16.msra.mxu0 %v301
      %587 = vmatprep.subr.bf16.mxu0 0
      %588 = vmatpush1.bf16.msra.mxu0 0
      %589 = vmatprep.subr.bf16.mxu0 0
      %590 = vmatpush1.bf16.msra.mxu0 0
      %591 = vmatprep.subr.bf16.mxu0 0
      %592 = vmatpush1.bf16.msra.mxu0 0
      %593 = vmatprep.subr.bf16.mxu0 0
      %594 = vmatpush1.bf16.msra.mxu0 0
      %595 = vmatprep.subr.bf16.mxu0 0
      %596 = vmatpush1.bf16.msra.mxu0 0
      %597 = vmatprep.subr.bf16.mxu0 0
      %598 = vmatpush1.bf16.msra.mxu0 0
      %599 = vmatprep.subr.bf16.mxu0 0
      %600 = vmatpush1.bf16.msra.mxu0 0
      %601 = vmatprep.subr.bf16.mxu0 0
      %602 = vmatpush1.bf16.msra.mxu0 0
      %603 = vmatprep.subr.bf16.mxu0 0
      %604 = vmatpush1.bf16.msra.mxu0 0
      %605 = vmatprep.subr.bf16.mxu0 0
      %606 = vmatpush1.bf16.msra.mxu0 0
      %607 = vmatprep.subr.bf16.mxu0 0
      %608 = vmatpush1.bf16.msra.mxu0 0
      %609 = vmatprep.subr.bf16.mxu0 0
      %610 = vmatpush1.bf16.msra.mxu0 0
      %611 = vmatprep.subr.bf16.mxu0 0
      %612 = vmatpush1.bf16.msra.mxu0 0
      %613 = vmatprep.subr.bf16.mxu0 0
      %614 = vmatpush1.bf16.msra.mxu0 0
      %615 = vmatprep.subr.bf16.mxu0 0
      %616 = vmatpush1.bf16.msra.mxu0 0
      %617 = vmatprep.mubr.bf16.mxu0 0
      %618 = vmatmul.mubr.bf16.gmra.mrb[0].mxu0 %v583
      %v619 = vpop.f32.mrb[0].mxu0
      %v620 = vadd.f32 %v281, %v619
      %v621 = vpop.f32.mrb[0].mxu0
      %v622 = vpop.f32.mrb[0].mxu0
      %v623 = vadd.f32 %v282, %v622
      %v624 = vpop.f32.mrb[0].mxu0
      %625 = vdwg.mxu0
      %v627 = vsel %vm469, %v579, 0
      %629 = vmatprep.subr.bf16.mxu0 0
      %630 = vmatpush1.bf16.msra.mxu0 %v302
      %631 = vmatprep.subr.bf16.mxu0 0
      %632 = vmatpush1.bf16.msra.mxu0 0
      %633 = vmatprep.subr.bf16.mxu0 0
      %634 = vmatpush1.bf16.msra.mxu0 0
      %635 = vmatprep.subr.bf16.mxu0 0
      %636 = vmatpush1.bf16.msra.mxu0 0
      %637 = vmatprep.subr.bf16.mxu0 0
      %638 = vmatpush1.bf16.msra.mxu0 0
      %639 = vmatprep.subr.bf16.mxu0 0
      %640 = vmatpush1.bf16.msra.mxu0 0
      %641 = vmatprep.subr.bf16.mxu0 0
      %642 = vmatpush1.bf16.msra.mxu0 0
      %643 = vmatprep.subr.bf16.mxu0 0
      %644 = vmatpush1.bf16.msra.mxu0 0
      %645 = vmatprep.subr.bf16.mxu0 0
      %646 = vmatpush1.bf16.msra.mxu0 0
      %647 = vmatprep.subr.bf16.mxu0 0
      %648 = vmatpush1.bf16.msra.mxu0 0
      %649 = vmatprep.subr.bf16.mxu0 0
      %650 = vmatpush1.bf16.msra.mxu0 0
      %651 = vmatprep.subr.bf16.mxu0 0
      %652 = vmatpush1.bf16.msra.mxu0 0
      %653 = vmatprep.subr.bf16.mxu0 0
      %654 = vmatpush1.bf16.msra.mxu0 0
      %655 = vmatprep.subr.bf16.mxu0 0
      %656 = vmatpush1.bf16.msra.mxu0 0
      %657 = vmatprep.subr.bf16.mxu0 0
      %658 = vmatpush1.bf16.msra.mxu0 0
      %659 = vmatprep.subr.bf16.mxu0 0
      %660 = vmatpush1.bf16.msra.mxu0 0
      %661 = vmatprep.mubr.bf16.mxu0 0
      %662 = vmatmul.mubr.bf16.gmra.mrb[0].mxu0 %v627
      %v663 = vpop.f32.mrb[0].mxu0
      %v664 = vadd.f32 %v283, %v663
      %v665 = vpop.f32.mrb[0].mxu0
      %v666 = vpop.f32.mrb[0].mxu0
      %v667 = vadd.f32 %v284, %v666
      %v668 = vpop.f32.mrb[0].mxu0
      %669 = vdwg.mxu0
      %v671 = vsel %vm469, %v580, 0
      %673 = vmatprep.subr.bf16.mxu0 0
      %674 = vmatpush1.bf16.msra.mxu0 %v303
      %675 = vmatprep.subr.bf16.mxu0 0
      %676 = vmatpush1.bf16.msra.mxu0 0
      %677 = vmatprep.subr.bf16.mxu0 0
      %678 = vmatpush1.bf16.msra.mxu0 0
      %679 = vmatprep.subr.bf16.mxu0 0
      %680 = vmatpush1.bf16.msra.mxu0 0
      %681 = vmatprep.subr.bf16.mxu0 0
      %682 = vmatpush1.bf16.msra.mxu0 0
      %683 = vmatprep.subr.bf16.mxu0 0
      %684 = vmatpush1.bf16.msra.mxu0 0
      %685 = vmatprep.subr.bf16.mxu0 0
      %686 = vmatpush1.bf16.msra.mxu0 0
      %687 = vmatprep.subr.bf16.mxu0 0
      %688 = vmatpush1.bf16.msra.mxu0 0
      %689 = vmatprep.subr.bf16.mxu0 0
      %690 = vmatpush1.bf16.msra.mxu0 0
      %691 = vmatprep.subr.bf16.mxu0 0
      %692 = vmatpush1.bf16.msra.mxu0 0
      %693 = vmatprep.subr.bf16.mxu0 0
      %694 = vmatpush1.bf16.msra.mxu0 0
      %695 = vmatprep.subr.bf16.mxu0 0
      %696 = vmatpush1.bf16.msra.mxu0 0
      %697 = vmatprep.subr.bf16.mxu0 0
      %698 = vmatpush1.bf16.msra.mxu0 0
      %699 = vmatprep.subr.bf16.mxu0 0
      %700 = vmatpush1.bf16.msra.mxu0 0
      %701 = vmatprep.subr.bf16.mxu0 0
      %702 = vmatpush1.bf16.msra.mxu0 0
      %703 = vmatprep.subr.bf16.mxu0 0
      %704 = vmatpush1.bf16.msra.mxu0 0
      %705 = vmatprep.mubr.bf16.mxu0 0
      %706 = vmatmul.mubr.bf16.gmra.mrb[0].mxu0 %v671
      %v707 = vpop.f32.mrb[0].mxu0
      %v708 = vadd.f32 %v285, %v707
      %v709 = vpop.f32.mrb[0].mxu0
      %v710 = vpop.f32.mrb[0].mxu0
      %v711 = vadd.f32 %v286, %v710
      %v712 = vpop.f32.mrb[0].mxu0
      %713 = vdwg.mxu0
      %v715 = vsel %vm469, %v581, 0
      %717 = vmatprep.subr.bf16.mxu0 0
      %718 = vmatpush1.bf16.msra.mxu0 %v304
      %719 = vmatprep.subr.bf16.mxu0 0
      %720 = vmatpush1.bf16.msra.mxu0 0
      %721 = vmatprep.subr.bf16.mxu0 0
      %722 = vmatpush1.bf16.msra.mxu0 0
      %723 = vmatprep.subr.bf16.mxu0 0
      %724 = vmatpush1.bf16.msra.mxu0 0
      %725 = vmatprep.subr.bf16.mxu0 0
      %726 = vmatpush1.bf16.msra.mxu0 0
      %727 = vmatprep.subr.bf16.mxu0 0
      %728 = vmatpush1.bf16.msra.mxu0 0
      %729 = vmatprep.subr.bf16.mxu0 0
      %730 = vmatpush1.bf16.msra.mxu0 0
      %731 = vmatprep.subr.bf16.mxu0 0
      %732 = vmatpush1.bf16.msra.mxu0 0
      %733 = vmatprep.subr.bf16.mxu0 0
      %734 = vmatpush1.bf16.msra.mxu0 0
      %735 = vmatprep.subr.bf16.mxu0 0
      %736 = vmatpush1.bf16.msra.mxu0 0
      %737 = vmatprep.subr.bf16.mxu0 0
      %738 = vmatpush1.bf16.msra.mxu0 0
      %739 = vmatprep.subr.bf16.mxu0 0
      %740 = vmatpush1.bf16.msra.mxu0 0
      %741 = vmatprep.subr.bf16.mxu0 0
      %742 = vmatpush1.bf16.msra.mxu0 0
      %743 = vmatprep.subr.bf16.mxu0 0
      %744 = vmatpush1.bf16.msra.mxu0 0
      %745 = vmatprep.subr.bf16.mxu0 0
      %746 = vmatpush1.bf16.msra.mxu0 0
      %747 = vmatprep.subr.bf16.mxu0 0
      %748 = vmatpush1.bf16.msra.mxu0 0
      %749 = vmatprep.mubr.bf16.mxu0 0
      %750 = vmatmul.mubr.bf16.gmra.mrb[0].mxu0 %v715
      %v751 = vpop.f32.mrb[0].mxu0
      %v752 = vadd.f32 %v287, %v751
      %v753 = vpop.f32.mrb[0].mxu0
      %v754 = vpop.f32.mrb[0].mxu0
      %v755 = vadd.f32 %v288, %v754
      %v756 = vpop.f32.mrb[0].mxu0
      %757 = vdwg.mxu0
      %v758 = vpack.c.bf16 %v623, %v620
      %v759 = vpack.c.bf16 %v667, %v664
      %v760 = vpack.c.bf16 %v711, %v708
      %v761 = vpack.c.bf16 %v755, %v752
      %v766 = vunpack.c.l.b16 %v758
      %v767 = vunpack.c.h.b16 %v758
      %v768 = vunpack.c.l.b16 %v759
      %v769 = vunpack.c.h.b16 %v759
      %v770 = vunpack.c.l.b16 %v760
      %v771 = vunpack.c.h.b16 %v760
      %v772 = vunpack.c.l.b16 %v761
      %v773 = vunpack.c.h.b16 %v761
      %v774 = vpack.c.b16 %v766, %v766
      %v775 = vpack.c.b16 %v767, %v767
      %v776 = vpack.c.b16 %v768, %v768
      %v777 = vpack.c.b16 %v769, %v769
      %v778 = vpack.c.b16 %v770, %v770
      %v779 = vpack.c.b16 %v771, %v771
      %v780 = vpack.c.b16 %v772, %v772
      %v781 = vpack.c.b16 %v773, %v773
      %790 = vst [vmem:[%s242] sm:$0xf] %v774
      %791 = vst [vmem:[%s242 + $0x4] sm:$0xf] %v775
      %792 = vst [vmem:[%s242 + $0x8] sm:$0xf] %v776
      %793 = vst [vmem:[%s242 + $0xc] sm:$0xf] %v777
      %794 = vst [vmem:[%s242 + $0x10] sm:$0xf] %v778
      %795 = vst [vmem:[%s242 + $0x14] sm:$0xf] %v779
      %796 = vst [vmem:[%s242 + $0x18] sm:$0xf] %v780
      %797 = vst [vmem:[%s242 + $0x1c] sm:$0xf] %v781
      %v798 = vadd.f32 %v620, %v623
      %v799 = vadd.f32 %v798, %v664
      %v800 = vadd.f32 %v799, %v667
      %v801 = vadd.f32 %v800, %v708
      %v802 = vadd.f32 %v801, %v711
      %v803 = vadd.f32 %v802, %v752
      %v804 = vadd.f32 %v803, %v755
      %v805 = vrot.slane %v804, 4
      %v806 = vadd.f32 %v804, %v805
      %v807 = vrot.slane %v806, 2
      %v808 = vadd.f32 %v806, %v807
      %v809 = vrot.slane %v808, 1
      %v810 = vadd.f32 %v808, %v809
      %811 = vst [vmem:[%s246] sm:$0x1] %v810
      %v812 = vmul.f32 %v620, %v620
      %v813 = vmul.f32 %v623, %v623
      %v814 = vmul.f32 %v664, %v664
      %v815 = vmul.f32 %v667, %v667
      %v816 = vmul.f32 %v708, %v708
      %v817 = vmul.f32 %v711, %v711
      %v818 = vmul.f32 %v752, %v752
      %v819 = vmul.f32 %v755, %v755
      %v820 = vadd.f32 %v812, %v813
      %v821 = vadd.f32 %v820, %v814
      %v822 = vadd.f32 %v821, %v815
      %v823 = vadd.f32 %v822, %v816
      %v824 = vadd.f32 %v823, %v817
      %v825 = vadd.f32 %v824, %v818
      %v826 = vadd.f32 %v825, %v819
      %v827 = vrot.slane %v826, 4
      %v828 = vadd.f32 %v826, %v827
      %v829 = vrot.slane %v828, 2
      %v830 = vadd.f32 %v828, %v829
      %v831 = vrot.slane %v830, 1
      %v832 = vadd.f32 %v830, %v831
      %833 = vst [vmem:[%s249] sm:$0x1] %v832
      %s834 = smul.u32 4, %s17
      %p835 = scmp.lt.s32.totalorder %s834, 15
      %s836 = scalar_select %p835, %s834, 15
      %s837 = smul.addr %s836, 2
      %s838 = smul.addr %s837, 4
      %s839 = scalar_lea.vmem %s3, %s838
      %p840 = scmp.lt.s32.totalorder %s17, 3
      %s841 = scalar_select %p840, %s17, 3
      %s842 = scalar_lea.vmem %s4, %s841
      %p843 = scmp.lt.s32.totalorder %s17, 3
      %s844 = scalar_select %p843, %s17, 3
      %s845 = scalar_lea.vmem %s5, %s844
      // Predicated region
      $region33: #{_lambda_.4} parent=31 // pred_check
        %p846 = pneg %p103
      $region34: #{_lambda_.4} parent=31 // pred_check_branch
        %848 = sbr.rel (%p846) target = $region36
      $region35: #{_lambda_.4} parent=31 // pred_region
        %s849 = smul.u32 4, %s17
      $region36: #{_lambda_.4} parent=31 // pred_fallthru
        _
      // Predicated region
      $region37: #{_lambda_.4} parent=31 // pred_check
        %p850 = pneg %p129
      $region38: #{_lambda_.4} parent=31 // pred_check_branch
        %852 = sbr.rel (%p850) target = $region40
      $region39: #{_lambda_.4} parent=31 // pred_region
        _
      $region40: #{_lambda_.4} parent=31 // pred_fallthru
        _
      // Predicated region
      $region41: #{_lambda_.4} parent=31 // pred_check
        %p853 = pneg %p155
      $region42: #{_lambda_.4} parent=31 // pred_check_branch
        %855 = sbr.rel (%p853) target = $region44
      $region43: #{_lambda_.4} parent=31 // pred_region
        _
      $region44: #{_lambda_.4} parent=31 // pred_fallthru
        _
    $region32: #{_lambda_.4} parent=5 // pred_fallthru
      _
    %p856 = scmp.le.s32.totalorder 2, %s12
    // Predicated region
    $region45: #{_lambda_.4} parent=5 // pred_check
      %p857 = pneg %p856
    $region46: #{_lambda_.4} parent=5 // pred_check_branch
      %859 = sbr.rel (%p857) target = $region48
    $region47: #{_lambda_.4} parent=5 // pred_region
      %s860 = ssub.s32 %s12, 2
      // Predicated region
      $region49: #{_lambda_.4} parent=47 // pred_check
        %p861 = pneg %p109
      $region50: #{_lambda_.4} parent=47 // pred_check_branch
        %863 = sbr.rel (%p861) target = $region52
      $region51: #{_lambda_.4} parent=47 // pred_region
        %s864 = smul.u32 4, %s18
        %p865 = scmp.lt.s32.totalorder %s864, 15
        %s866 = scalar_select %p865, %s864, 15
        %s867 = smul.addr %s866, 2
        %s868 = smul.addr %s867, 4
        %s869 = scalar_lea.vmem %s3, %s868
      $region52: #{_lambda_.4} parent=47 // pred_fallthru
        _
      // Predicated region
      $region53: #{_lambda_.4} parent=47 // pred_check
        %p870 = pneg %p135
      $region54: #{_lambda_.4} parent=47 // pred_check_branch
        %872 = sbr.rel (%p870) target = $region56
      $region55: #{_lambda_.4} parent=47 // pred_region
        %p873 = scmp.lt.s32.totalorder %s18, 3
        %s874 = scalar_select %p873, %s18, 3
        %s875 = scalar_lea.vmem %s4, %s874
      $region56: #{_lambda_.4} parent=47 // pred_fallthru
        _
      // Predicated region
      $region57: #{_lambda_.4} parent=47 // pred_check
        %p876 = pneg %p161
      $region58: #{_lambda_.4} parent=47 // pred_check_branch
        %878 = sbr.rel (%p876) target = $region60
      $region59: #{_lambda_.4} parent=47 // pred_region
        %p879 = scmp.lt.s32.totalorder %s18, 3
        %s880 = scalar_select %p879, %s18, 3
        %s881 = scalar_lea.vmem %s5, %s880
      $region60: #{_lambda_.4} parent=47 // pred_fallthru
        _
    $region48: #{_lambda_.4} parent=5 // pred_fallthru
      _
  $region6: #{_lambda_.4} parent=0 // loop_footer
    %s16 = sadd.s32 1, %s12
  $region7: #{_lambda_.4} parent=0 // loop_footer_branch
    %11 = sbr.rel target = $region3
  $region8: #{_lambda_.4} parent=0 // loop_exit
    _

// kernel: _lambda_.6
$region0: #{_lambda_.6}
  #allocation0 [shape = 'u32[]', space=smem, size = 0x4, offset = 0x4, fixed_abs, tag = 'smem constant byte address 0x4 - core index']
  #allocation1 [shape = 'u32[144,128]{1,0:T(1,128)}', space=vmem, size = 0x12000, scoped, tag = 'internal scratch']
  %s0 = inlined_call_operand.vmem [shape: f32[1,128], index: 0, kind: input, shape index: {}]
  %s1 = inlined_call_operand.vmem [shape: f32[1,128], index: 1, kind: input, shape index: {}]
  %s2 = inlined_call_operand.vmem [shape: bf16[16,16,128], index: 2, kind: input, shape index: {}]
  %s3 = inlined_call_operand.vmem [shape: bf16[16,16,128], index: 3, kind: output, shape index: {0}]
  %s4 = inlined_call_operand.vmem [shape: f32[4,1,128], index: 4, kind: output, shape index: {1}]
  %s5 = inlined_call_operand.vmem [shape: f32[4,1,128], index: 5, kind: output, shape index: {2}]
  %6 = xla_tuple %s3, %s4, %s5
  %s7 = sld [smem:[#allocation0]]
  $region61: #{_lambda_.6} parent=0
    _
  %s9 = ssub.s32 1, %s7
  %s10 = scalar_select 0, %s9, %s7
  loop: start=0, step=1, limit=6
  $region2: #{_lambda_.6} parent=0 // loop_pre_header
    _
  $region3: #{_lambda_.6} parent=0 // loop_header
    %s12 = sphi 0, %s16
    %p13 = scmp.ge.s32.totalorder %s12, 6
    %s20 = sphi 0, %s20
    %s22 = sphi 0, %s20
    %s23 = sphi 0, %s22
    %s37 = sphi 0, %s23
    %s41 = sphi 0, %s41
    %s43 = sphi 0, %s41
    %s44 = sphi 0, %s43
    %s58 = sphi 0, %s44
    %s64 = sphi 0, %s66
    %s67 = sphi 0, %s64
    %s68 = sphi 0, %s67
    %s84 = sphi 0, %s68
    %s90 = sphi 0, %s92
    %s93 = sphi 0, %s90
    %s94 = sphi 0, %s93
    %s110 = sphi 0, %s94
    %s116 = sphi 0, %s118
    %s119 = sphi 0, %s116
    %s120 = sphi 0, %s119
    %s136 = sphi 0, %s120
    %s142 = sphi 0, %s144
    %s145 = sphi 0, %s142
    %s146 = sphi 0, %s145
    %s162 = sphi 0, %s146
  $region4: #{_lambda_.6} parent=0 // loop_header_branch
    %15 = sbr.rel (%p13) target = $region8
  $region5: #{_lambda_.6} parent=0 // loop_body
    %s17 = ssub.s32 %s12, 1
    %s18 = ssub.s32 %s12, 2
    %s19 = sadd.s32 %s12, 1
    %s21 = sadd.s32 %s20, 1
    %p24 = scmp.eq.s32.totalorder %s12, 3
    %p25 = scmp.ne.s32.totalorder %s20, %s22
    %p26 = scmp.eq.s32.totalorder %s12, 0
    %p27 = por %p25, %p26
    %p28 = scmp.ne.s32.totalorder %s20, %s22
    %p29 = scmp.eq.s32.totalorder %s17, 3
    %p30 = por %p28, %p29
    %p31 = scmp.ne.s32.totalorder %s22, %s23
    %p32 = scmp.eq.s32.totalorder %s17, 0
    %p33 = por %p31, %p32
    %p34 = scmp.ne.s32.totalorder %s22, %s23
    %p35 = scmp.eq.s32.totalorder %s18, 3
    %p36 = por %p34, %p35
    %p38 = scmp.ne.s32.totalorder %s23, %s37
    %p39 = scmp.eq.s32.totalorder %s18, 0
    %p40 = por %p38, %p39
    %s42 = sadd.s32 %s41, 1
    %p45 = scmp.eq.s32.totalorder %s12, 3
    %p46 = scmp.ne.s32.totalorder %s41, %s43
    %p47 = scmp.eq.s32.totalorder %s12, 0
    %p48 = por %p46, %p47
    %p49 = scmp.ne.s32.totalorder %s41, %s43
    %p50 = scmp.eq.s32.totalorder %s17, 3
    %p51 = por %p49, %p50
    %p52 = scmp.ne.s32.totalorder %s43, %s44
    %p53 = scmp.eq.s32.totalorder %s17, 0
    %p54 = por %p52, %p53
    %p55 = scmp.ne.s32.totalorder %s43, %s44
    %p56 = scmp.eq.s32.totalorder %s18, 3
    %p57 = por %p55, %p56
    %p59 = scmp.ne.s32.totalorder %s44, %s58
    %p60 = scmp.eq.s32.totalorder %s18, 0
    %p61 = por %p59, %p60
    %s62 = ssub.s32 %s12, %s19
    %p63 = scmp.eq.s32.totalorder %s62, 0
    %s65 = sadd.s32 %s64, 1
    %s66 = scalar_select %p63, %s64, %s65
    %p69 = pneg %p63
    %p70 = scmp.eq.s32.totalorder %s12, 3
    %p71 = por %p69, %p70
    %p72 = scmp.ne.s32.totalorder %s64, %s67
    %p73 = scmp.eq.s32.totalorder %s12, 0
    %p74 = por %p72, %p73
    %p75 = scmp.ne.s32.totalorder %s64, %s67
    %p76 = scmp.eq.s32.totalorder %s17, 3
    %p77 = por %p75, %p76
    %p78 = scmp.ne.s32.totalorder %s67, %s68
    %p79 = scmp.eq.s32.totalorder %s17, 0
    %p80 = por %p78, %p79
    %p81 = scmp.ne.s32.totalorder %s67, %s68
    %p82 = scmp.eq.s32.totalorder %s18, 3
    %p83 = por %p81, %p82
    %p85 = scmp.ne.s32.totalorder %s68, %s84
    %p86 = scmp.eq.s32.totalorder %s18, 0
    %p87 = por %p85, %p86
    %s88 = ssub.s32 %s12, %s19
    %p89 = scmp.eq.s32.totalorder %s88, 0
    %s91 = sadd.s32 %s90, 1
    %s92 = scalar_select %p89, %s90, %s91
    %p95 = pneg %p89
    %p96 = scmp.eq.s32.totalorder %s12, 3
    %p97 = por %p95, %p96
    %p98 = scmp.ne.s32.totalorder %s90, %s93
    %p99 = scmp.eq.s32.totalorder %s12, 0
    %p100 = por %p98, %p99
    %p101 = scmp.ne.s32.totalorder %s90, %s93
    %p102 = scmp.eq.s32.totalorder %s17, 3
    %p103 = por %p101, %p102
    %p104 = scmp.ne.s32.totalorder %s93, %s94
    %p105 = scmp.eq.s32.totalorder %s17, 0
    %p106 = por %p104, %p105
    %p107 = scmp.ne.s32.totalorder %s93, %s94
    %p108 = scmp.eq.s32.totalorder %s18, 3
    %p109 = por %p107, %p108
    %p111 = scmp.ne.s32.totalorder %s94, %s110
    %p112 = scmp.eq.s32.totalorder %s18, 0
    %p113 = por %p111, %p112
    %s114 = ssub.s32 %s12, %s19
    %p115 = scmp.eq.s32.totalorder %s114, 0
    %s117 = sadd.s32 %s116, 1
    %s118 = scalar_select %p115, %s116, %s117
    %p121 = pneg %p115
    %p122 = scmp.eq.s32.totalorder %s12, 3
    %p123 = por %p121, %p122
    %p124 = scmp.ne.s32.totalorder %s116, %s119
    %p125 = scmp.eq.s32.totalorder %s12, 0
    %p126 = por %p124, %p125
    %p127 = scmp.ne.s32.totalorder %s116, %s119
    %p128 = scmp.eq.s32.totalorder %s17, 3
    %p129 = por %p127, %p128
    %p130 = scmp.ne.s32.totalorder %s119, %s120
    %p131 = scmp.eq.s32.totalorder %s17, 0
    %p132 = por %p130, %p131
    %p133 = scmp.ne.s32.totalorder %s119, %s120
    %p134 = scmp.eq.s32.totalorder %s18, 3
    %p135 = por %p133, %p134
    %p137 = scmp.ne.s32.totalorder %s120, %s136
    %p138 = scmp.eq.s32.totalorder %s18, 0
    %p139 = por %p137, %p138
    %s140 = ssub.s32 %s12, %s19
    %p141 = scmp.eq.s32.totalorder %s140, 0
    %s143 = sadd.s32 %s142, 1
    %s144 = scalar_select %p141, %s142, %s143
    %p147 = pneg %p141
    %p148 = scmp.eq.s32.totalorder %s12, 3
    %p149 = por %p147, %p148
    %p150 = scmp.ne.s32.totalorder %s142, %s145
    %p151 = scmp.eq.s32.totalorder %s12, 0
    %p152 = por %p150, %p151
    %p153 = scmp.ne.s32.totalorder %s142, %s145
    %p154 = scmp.eq.s32.totalorder %s17, 3
    %p155 = por %p153, %p154
    %p156 = scmp.ne.s32.totalorder %s145, %s146
    %p157 = scmp.eq.s32.totalorder %s17, 0
    %p158 = por %p156, %p157
    %p159 = scmp.ne.s32.totalorder %s145, %s146
    %p160 = scmp.eq.s32.totalorder %s18, 3
    %p161 = por %p159, %p160
    %p163 = scmp.ne.s32.totalorder %s146, %s162
    %p164 = scmp.eq.s32.totalorder %s18, 0
    %p165 = por %p163, %p164
    %p166 = scmp.le.s32.totalorder 1, %s12
    %p167 = scmp.lt.s32.totalorder %s12, 5
    %p168 = pnand %p166, %p167
    %p169 = pneg %p168
    // Predicated region
    $region9: #{_lambda_.6} parent=5 // pred_check
      _
    $region10: #{_lambda_.6} parent=5 // pred_check_branch
      %171 = sbr.rel (%p168) target = $region12
    $region11: #{_lambda_.6} parent=5 // pred_region
      %s172 = ssub.s32 %s12, 1
      // Predicated region
      $region13: #{_lambda_.6} parent=11 // pred_check
        %p173 = pneg %p33
      $region14: #{_lambda_.6} parent=11 // pred_check_branch
        %175 = sbr.rel (%p173) target = $region16
      $region15: #{_lambda_.6} parent=11 // pred_region
        _
      $region16: #{_lambda_.6} parent=11 // pred_fallthru
        _
      // Predicated region
      $region17: #{_lambda_.6} parent=11 // pred_check
        %p176 = pneg %p54
      $region18: #{_lambda_.6} parent=11 // pred_check_branch
        %178 = sbr.rel (%p176) target = $region20
      $region19: #{_lambda_.6} parent=11 // pred_region
        _
      $region20: #{_lambda_.6} parent=11 // pred_fallthru
        _
    $region12: #{_lambda_.6} parent=5 // pred_fallthru
      _
    %p179 = scmp.lt.s32.totalorder %s12, 4
    // Predicated region
    $region21: #{_lambda_.6} parent=5 // pred_check
      %p180 = pneg %p179
    $region22: #{_lambda_.6} parent=5 // pred_check_branch
      %182 = sbr.rel (%p180) target = $region24
    $region23: #{_lambda_.6} parent=5 // pred_region
      // Predicated region
      $region25: #{_lambda_.6} parent=23 // pred_check
        %p183 = pneg %p74
      $region26: #{_lambda_.6} parent=23 // pred_check_branch
        %185 = sbr.rel (%p183) target = $region28
      $region27: #{_lambda_.6} parent=23 // pred_region
        %s186 = smul.u32 4, %s12
        %p187 = scmp.lt.s32.totalorder %s186, 15
        %s188 = scalar_select %p187, %s186, 15
        %s189 = smul.addr %s188, 2
        %s190 = smul.addr %s189, 4
        %s191 = scalar_lea.vmem %s2, %s190
        %s192 = smul.u32 4, %s12
      $region28: #{_lambda_.6} parent=23 // pred_fallthru
        _
    $region24: #{_lambda_.6} parent=5 // pred_fallthru
      _
    %p193 = scmp.le.s32.totalorder 1, %s12
    %p194 = scmp.lt.s32.totalorder %s12, 5
    %p195 = pnand %p193, %p194
    %p196 = pneg %p195
    // Predicated region
    $region29: #{_lambda_.6} parent=5 // pred_check
      _
    $region30: #{_lambda_.6} parent=5 // pred_check_branch
      %198 = sbr.rel (%p195) target = $region32
    $region31: #{_lambda_.6} parent=5 // pred_region
      %s199 = ssub.s32 %s12, 1
      %p200 = pneg %p33
      %p201 = pneg %p30
      %p202 = pneg %p54
      %p203 = pneg %p51
      %s204 = smul.u32 4, %s17
      %p205 = scmp.lt.s32.totalorder %s204, 15
      %s206 = scalar_select %p205, %s204, 15
      %s207 = smul.addr %s206, 2
      %s208 = smul.addr %s207, 4
      %s209 = scalar_lea.vmem %s2, %s208
      %p210 = pneg %p80
      %p211 = pneg %p77
      %p212 = pneg %p106
      %p213 = pneg %p103
      %s214 = smul.u32 4, %s17
      %p215 = scmp.lt.s32.totalorder %s214, 15
      %s216 = scalar_select %p215, %s214, 15
      %s217 = smul.addr %s216, 2
      %s218 = smul.addr %s217, 4
      %s219 = scalar_lea.vmem %s3, %s218
      %p220 = pneg %p132
      %p221 = pneg %p129
      %p222 = scmp.lt.s32.totalorder %s17, 3
      %s223 = scalar_select %p222, %s17, 3
      %s224 = scalar_lea.vmem %s4, %s223
      %p225 = pneg %p158
      %p226 = pneg %p155
      %p227 = scmp.lt.s32.totalorder %s17, 3
      %s228 = scalar_select %p227, %s17, 3
      %s229 = scalar_lea.vmem %s5, %s228
      %s230 = smul.u32 4, %s17
      %p231 = scmp.lt.s32.totalorder %s230, 15
      %s232 = scalar_select %p231, %s230, 15
      %s233 = smul.addr %s232, 2
      %s234 = smul.addr %s233, 4
      %s235 = scalar_lea.vmem %s2, %s234
      %s236 = smul.u32 4, %s17
      %s237 = smul.u32 4, %s17
      %p238 = scmp.lt.s32.totalorder %s237, 15
      %s239 = scalar_select %p238, %s237, 15
      %s240 = smul.addr %s239, 2
      %s241 = smul.addr %s240, 4
      %s242 = scalar_lea.vmem %s3, %s241
      %s243 = smul.u32 4, %s17
      %p244 = scmp.lt.s32.totalorder %s17, 3
      %s245 = scalar_select %p244, %s17, 3
      %s246 = scalar_lea.vmem %s4, %s245
      %p247 = scmp.lt.s32.totalorder %s17, 3
      %s248 = scalar_select %p247, %s17, 3
      %s249 = scalar_lea.vmem %s5, %s248
      %v251 = vld [vmem:[%s235] sm:$0xf]
      %v252 = vld [vmem:[%s235 + $0x4] sm:$0xf]
      %v253 = vld [vmem:[%s235 + $0x8] sm:$0xf]
      %v254 = vld [vmem:[%s235 + $0xc] sm:$0xf]
      %v255 = vld [vmem:[%s235 + $0x10] sm:$0xf]
      %v256 = vld [vmem:[%s235 + $0x14] sm:$0xf]
      %v257 = vld [vmem:[%s235 + $0x18] sm:$0xf]
      %v258 = vld [vmem:[%s235 + $0x1c] sm:$0xf]
      %v259 = vunpack.c.l.bf16 %v251
      %v260 = vunpack.c.l.bf16 %v252
      %v261 = vunpack.c.l.bf16 %v253
      %v262 = vunpack.c.l.bf16 %v254
      %v263 = vunpack.c.l.bf16 %v255
      %v264 = vunpack.c.l.bf16 %v256
      %v265 = vunpack.c.l.bf16 %v257
      %v266 = vunpack.c.l.bf16 %v258
      %v267 = vld [vmem:[%s0] sm:$0x1]
      %v268 = vld [vmem:[%s1] sm:$0x1]
      %v270 = vlaneseq
      %v271 = vshrl.u32 %v270, 7
      %v272 = vsub.s32 0, %v271
      %v273 = vrot.slane %v267, %v272
      %v275 = vmul.f32 %v259, %v273
      %v276 = vmul.f32 %v260, %v273
      %v277 = vmul.f32 %v261, %v273
      %v278 = vmul.f32 %v262, %v273
      %v279 = vmul.f32 %v263, %v273
      %v280 = vmul.f32 %v264, %v273
      %v281 = vmul.f32 %v265, %v273
      %v282 = vmul.f32 %v266, %v273
      %v284 = vlaneseq
      %v285 = vshrl.u32 %v284, 7
      %v286 = vsub.s32 0, %v285
      %v287 = vrot.slane %v268, %v286
      %v289 = vadd.f32 %v275, %v287
      %v290 = vadd.f32 %v276, %v287
      %v291 = vadd.f32 %v277, %v287
      %v292 = vadd.f32 %v278, %v287
      %v293 = vadd.f32 %v279, %v287
      %v294 = vadd.f32 %v280, %v287
      %v295 = vadd.f32 %v281, %v287
      %v296 = vadd.f32 %v282, %v287
      %v297 = vmul.f32 %v289, 0.17677669
      %v298 = vmul.f32 %v290, 0.17677669
      %v299 = vmul.f32 %v291, 0.17677669
      %v300 = vmul.f32 %v292, 0.17677669
      %v301 = vmul.f32 %v293, 0.17677669
      %v302 = vmul.f32 %v294, 0.17677669
      %v303 = vmul.f32 %v295, 0.17677669
      %v304 = vmul.f32 %v296, 0.17677669
      %v305 = vpack.c.bf16 %v298, %v297
      %v306 = vpack.c.bf16 %v300, %v299
      %v307 = vpack.c.bf16 %v302, %v301
      %v308 = vpack.c.bf16 %v304, %v303
      %v309 = vpack.c.bf16 %v290, %v289
      %v310 = vpack.c.bf16 %v292, %v291
      %v311 = vpack.c.bf16 %v294, %v293
      %v312 = vpack.c.bf16 %v296, %v295
      %313 = vmatprep.subr.bf16.mxu0 0
      %314 = vmatpush1.bf16.xpose.msra.mxu0 %v309
      %315 = vmatprep.subr.bf16.mxu0 0
      %316 = vmatpush1.bf16.xpose.msra.mxu0 0
      %317 = vmatprep.subr.bf16.mxu0 0
      %318 = vmatpush1.bf16.xpose.msra.mxu0 0
      %319 = vmatprep.subr.bf16.mxu0 0
      %320 = vmatpush1.bf16.xpose.msra.mxu0 0
      %321 = vmatprep.subr.bf16.mxu0 0
      %322 = vmatpush1.bf16.xpose.msra.mxu0 0
      %323 = vmatprep.subr.bf16.mxu0 0
      %324 = vmatpush1.bf16.xpose.msra.mxu0 0
      %325 = vmatprep.subr.bf16.mxu0 0
      %326 = vmatpush1.bf16.xpose.msra.mxu0 0
      %327 = vmatprep.subr.bf16.mxu0 0
      %328 = vmatpush1.bf16.xpose.msra.mxu0 0
      %329 = vmatprep.subr.bf16.mxu0 0
      %330 = vmatpush1.bf16.xpose.msra.mxu0 0
      %331 = vmatprep.subr.bf16.mxu0 0
      %332 = vmatpush1.bf16.xpose.msra.mxu0 0
      %333 = vmatprep.subr.bf16.mxu0 0
      %334 = vmatpush1.bf16.xpose.msra.mxu0 0
      %335 = vmatprep.subr.bf16.mxu0 0
      %336 = vmatpush1.bf16.xpose.msra.mxu0 0
      %337 = vmatprep.subr.bf16.mxu0 0
      %338 = vmatpush1.bf16.xpose.msra.mxu0 0
      %339 = vmatprep.subr.bf16.mxu0 0
      %340 = vmatpush1.bf16.xpose.msra.mxu0 0
      %341 = vmatprep.subr.bf16.mxu0 0
      %342 = vmatpush1.bf16.xpose.msra.mxu0 0
      %343 = vmatprep.subr.bf16.mxu0 0
      %344 = vmatpush1.bf16.xpose.msra.mxu0 0
      %345 = vmatprep.mubr.bf16.mxu0 0
      %346 = vmatmul.mubr.bf16.gmra.mrb[0].mxu0 %v305
      %v347 = vpop.f32.mrb[0].mxu0
      %v348 = vadd.f32 0.0, %v347
      %v349 = vpop.f32.mrb[0].mxu0
      %v350 = vpop.f32.mrb[0].mxu0
      %v351 = vadd.f32 0.0, %v350
      %v352 = vpop.f32.mrb[0].mxu0
      %353 = vdwg.mxu0
      %354 = vmatprep.subr.bf16.mxu0 0
      %355 = vmatpush1.bf16.xpose.msra.mxu0 %v310
      %356 = vmatprep.subr.bf16.mxu0 0
      %357 = vmatpush1.bf16.xpose.msra.mxu0 0
      %358 = vmatprep.subr.bf16.mxu0 0
      %359 = vmatpush1.bf16.xpose.msra.mxu0 0
      %360 = vmatprep.subr.bf16.mxu0 0
      %361 = vmatpush1.bf16.xpose.msra.mxu0 0
      %362 = vmatprep.subr.bf16.mxu0 0
      %363 = vmatpush1.bf16.xpose.msra.mxu0 0
      %364 = vmatprep.subr.bf16.mxu0 0
      %365 = vmatpush1.bf16.xpose.msra.mxu0 0
      %366 = vmatprep.subr.bf16.mxu0 0
      %367 = vmatpush1.bf16.xpose.msra.mxu0 0
      %368 = vmatprep.subr.bf16.mxu0 0
      %369 = vmatpush1.bf16.xpose.msra.mxu0 0
      %370 = vmatprep.subr.bf16.mxu0 0
      %371 = vmatpush1.bf16.xpose.msra.mxu0 0
      %372 = vmatprep.subr.bf16.mxu0 0
      %373 = vmatpush1.bf16.xpose.msra.mxu0 0
      %374 = vmatprep.subr.bf16.mxu0 0
      %375 = vmatpush1.bf16.xpose.msra.mxu0 0
      %376 = vmatprep.subr.bf16.mxu0 0
      %377 = vmatpush1.bf16.xpose.msra.mxu0 0
      %378 = vmatprep.subr.bf16.mxu0 0
      %379 = vmatpush1.bf16.xpose.msra.mxu0 0
      %380 = vmatprep.subr.bf16.mxu0 0
      %381 = vmatpush1.bf16.xpose.msra.mxu0 0
      %382 = vmatprep.subr.bf16.mxu0 0
      %383 = vmatpush1.bf16.xpose.msra.mxu0 0
      %384 = vmatprep.subr.bf16.mxu0 0
      %385 = vmatpush1.bf16.xpose.msra.mxu0 0
      %386 = vmatprep.mubr.bf16.mxu0 0
      %387 = vmatmul.mubr.bf16.gmra.mrb[0].mxu0 %v306
      %v388 = vpop.f32.mrb[0].mxu0
      %v389 = vadd.f32 0.0, %v388
      %v390 = vpop.f32.mrb[0].mxu0
      %v391 = vpop.f32.mrb[0].mxu0
      %v392 = vadd.f32 0.0, %v391
      %v393 = vpop.f32.mrb[0].mxu0
      %394 = vdwg.mxu0
      %395 = vmatprep.subr.bf16.mxu0 0
      %396 = vmatpush1.bf16.xpose.msra.mxu0 %v311
      %397 = vmatprep.subr.bf16.mxu0 0
      %398 = vmatpush1.bf16.xpose.msra.mxu0 0
      %399 = vmatprep.subr.bf16.mxu0 0
      %400 = vmatpush1.bf16.xpose.msra.mxu0 0
      %401 = vmatprep.subr.bf16.mxu0 0
      %402 = vmatpush1.bf16.xpose.msra.mxu0 0
      %403 = vmatprep.subr.bf16.mxu0 0
      %404 = vmatpush1.bf16.xpose.msra.mxu0 0
      %405 = vmatprep.subr.bf16.mxu0 0
      %406 = vmatpush1.bf16.xpose.msra.mxu0 0
      %407 = vmatprep.subr.bf16.mxu0 0
      %408 = vmatpush1.bf16.xpose.msra.mxu0 0
      %409 = vmatprep.subr.bf16.mxu0 0
      %410 = vmatpush1.bf16.xpose.msra.mxu0 0
      %411 = vmatprep.subr.bf16.mxu0 0
      %412 = vmatpush1.bf16.xpose.msra.mxu0 0
      %413 = vmatprep.subr.bf16.mxu0 0
      %414 = vmatpush1.bf16.xpose.msra.mxu0 0
      %415 = vmatprep.subr.bf16.mxu0 0
      %416 = vmatpush1.bf16.xpose.msra.mxu0 0
      %417 = vmatprep.subr.bf16.mxu0 0
      %418 = vmatpush1.bf16.xpose.msra.mxu0 0
      %419 = vmatprep.subr.bf16.mxu0 0
      %420 = vmatpush1.bf16.xpose.msra.mxu0 0
      %421 = vmatprep.subr.bf16.mxu0 0
      %422 = vmatpush1.bf16.xpose.msra.mxu0 0
      %423 = vmatprep.subr.bf16.mxu0 0
      %424 = vmatpush1.bf16.xpose.msra.mxu0 0
      %425 = vmatprep.subr.bf16.mxu0 0
      %426 = vmatpush1.bf16.xpose.msra.mxu0 0
      %427 = vmatprep.mubr.bf16.mxu0 0
      %428 = vmatmul.mubr.bf16.gmra.mrb[0].mxu0 %v307
      %v429 = vpop.f32.mrb[0].mxu0
      %v430 = vadd.f32 0.0, %v429
      %v431 = vpop.f32.mrb[0].mxu0
      %v432 = vpop.f32.mrb[0].mxu0
      %v433 = vadd.f32 0.0, %v432
      %v434 = vpop.f32.mrb[0].mxu0
      %435 = vdwg.mxu0
      %436 = vmatprep.subr.bf16.mxu0 0
      %437 = vmatpush1.bf16.xpose.msra.mxu0 %v312
      %438 = vmatprep.subr.bf16.mxu0 0
      %439 = vmatpush1.bf16.xpose.msra.mxu0 0
      %440 = vmatprep.subr.bf16.mxu0 0
      %441 = vmatpush1.bf16.xpose.msra.mxu0 0
      %442 = vmatprep.subr.bf16.mxu0 0
      %443 = vmatpush1.bf16.xpose.msra.mxu0 0
      %444 = vmatprep.subr.bf16.mxu0 0
      %445 = vmatpush1.bf16.xpose.msra.mxu0 0
      %446 = vmatprep.subr.bf16.mxu0 0
      %447 = vmatpush1.bf16.xpose.msra.mxu0 0
      %448 = vmatprep.subr.bf16.mxu0 0
      %449 = vmatpush1.bf16.xpose.msra.mxu0 0
      %450 = vmatprep.subr.bf16.mxu0 0
      %451 = vmatpush1.bf16.xpose.msra.mxu0 0
      %452 = vmatprep.subr.bf16.mxu0 0
      %453 = vmatpush1.bf16.xpose.msra.mxu0 0
      %454 = vmatprep.subr.bf16.mxu0 0
      %455 = vmatpush1.bf16.xpose.msra.mxu0 0
      %456 = vmatprep.subr.bf16.mxu0 0
      %457 = vmatpush1.bf16.xpose.msra.mxu0 0
      %458 = vmatprep.subr.bf16.mxu0 0
      %459 = vmatpush1.bf16.xpose.msra.mxu0 0
      %460 = vmatprep.subr.bf16.mxu0 0
      %461 = vmatpush1.bf16.xpose.msra.mxu0 0
      %462 = vmatprep.subr.bf16.mxu0 0
      %463 = vmatpush1.bf16.xpose.msra.mxu0 0
      %464 = vmatprep.subr.bf16.mxu0 0
      %465 = vmatpush1.bf16.xpose.msra.mxu0 0
      %466 = vmatprep.subr.bf16.mxu0 0
      %467 = vmatpush1.bf16.xpose.msra.mxu0 0
      %468 = vmatprep.mubr.bf16.mxu0 0
      %469 = vmatmul.mubr.bf16.gmra.mrb[0].mxu0 %v308
      %v470 = vpop.f32.mrb[0].mxu0
      %v471 = vadd.f32 0.0, %v470
      %v472 = vpop.f32.mrb[0].mxu0
      %v473 = vpop.f32.mrb[0].mxu0
      %v474 = vadd.f32 0.0, %v473
      %v475 = vpop.f32.mrb[0].mxu0
      %476 = vdwg.mxu0
      %vm477 = vcmask 130048
      %v478 = vsel %vm477, %v348, -inf
      %v479 = vsel %vm477, %v351, -inf
      %v480 = vmax.f32 %v478, %v479
      %v481 = vrot.slane %v480, 4
      %v482 = vmax.f32 %v480, %v481
      %v483 = vrot.slane %v482, 2
      %v484 = vmax.f32 %v482, %v483
      %v485 = vrot.slane %v484, 1
      %v486 = vmax.f32 %v484, %v485
      %v487 = vsel %vm477, %v389, -inf
      %v488 = vsel %vm477, %v392, -inf
      %v489 = vmax.f32 %v487, %v488
      %v490 = vrot.slane %v489, 4
      %v491 = vmax.f32 %v489, %v490
      %v492 = vrot.slane %v491, 2
      %v493 = vmax.f32 %v491, %v492
      %v494 = vrot.slane %v493, 1
      %v495 = vmax.f32 %v493, %v494
      %v496 = vsel %vm477, %v430, -inf
      %v497 = vsel %vm477, %v433, -inf
      %v498 = vmax.f32 %v496, %v497
      %v499 = vrot.slane %v498, 4
      %v500 = vmax.f32 %v498, %v499
      %v501 = vrot.slane %v500, 2
      %v502 = vmax.f32 %v500, %v501
      %v503 = vrot.slane %v502, 1
      %v504 = vmax.f32 %v502, %v503
      %v505 = vsel %vm477, %v471, -inf
      %v506 = vsel %vm477, %v474, -inf
      %v507 = vmax.f32 %v505, %v506
      %v508 = vrot.slane %v507, 4
      %v509 = vmax.f32 %v507, %v508
      %v510 = vrot.slane %v509, 2
      %v511 = vmax.f32 %v509, %v510
      %v512 = vrot.slane %v511, 1
      %v513 = vmax.f32 %v511, %v512
      %v514 = vsub.f32 %v348, %v486
      %v515 = vsub.f32 %v351, %v486
      %v516 = vsub.f32 %v389, %v495
      %v517 = vsub.f32 %v392, %v495
      %v518 = vsub.f32 %v430, %v504
      %v519 = vsub.f32 %v433, %v504
      %v520 = vsub.f32 %v471, %v513
      %v521 = vsub.f32 %v474, %v513
      %v522 = vmul.f32 %v514, 1.442695
      %v523 = vpow.pop %v522
      %v524 = vmul.f32 %v515, 1.442695
      %v525 = vpow.pop %v524
      %v526 = vmul.f32 %v516, 1.442695
      %v527 = vpow.pop %v526
      %v528 = vmul.f32 %v517, 1.442695
      %v529 = vpow.pop %v528
      %v530 = vmul.f32 %v518, 1.442695
      %v531 = vpow.pop %v530
      %v532 = vmul.f32 %v519, 1.442695
      %v533 = vpow.pop %v532
      %v534 = vmul.f32 %v520, 1.442695
      %v535 = vpow.pop %v534
      %v536 = vmul.f32 %v521, 1.442695
      %v537 = vpow.pop %v536
      %v538 = vsel %vm477, %v523, 0.0
      %v539 = vsel %vm477, %v525, 0.0
      %v540 = vadd.f32 %v538, %v539
      %v541 = vrot.slane %v540, 4
      %v542 = vadd.f32 %v540, %v541
      %v543 = vrot.slane %v542, 2
      %v544 = vadd.f32 %v542, %v543
      %v545 = vrot.slane %v544, 1
      %v546 = vadd.f32 %v544, %v545
      %v547 = vsel %vm477, %v527, 0.0
      %v548 = vsel %vm477, %v529, 0.0
      %v549 = vadd.f32 %v547, %v548
      %v550 = vrot.slane %v549, 4
      %v551 = vadd.f32 %v549, %v550
      %v552 = vrot.slane %v551, 2
      %v553 = vadd.f32 %v551, %v552
      %v554 = vrot.slane %v553, 1
      %v555 = vadd.f32 %v553, %v554
      %v556 = vsel %vm477, %v531, 0.0
      %v557 = vsel %vm477, %v533, 0.0
      %v558 = vadd.f32 %v556, %v557
      %v559 = vrot.slane %v558, 4
      %v560 = vadd.f32 %v558, %v559
      %v561 = vrot.slane %v560, 2
      %v562 = vadd.f32 %v560, %v561
      %v563 = vrot.slane %v562, 1
      %v564 = vadd.f32 %v562, %v563
      %v565 = vsel %vm477, %v535, 0.0
      %v566 = vsel %vm477, %v537, 0.0
      %v567 = vadd.f32 %v565, %v566
      %v568 = vrot.slane %v567, 4
      %v569 = vadd.f32 %v567, %v568
      %v570 = vrot.slane %v569, 2
      %v571 = vadd.f32 %v569, %v570
      %v572 = vrot.slane %v571, 1
      %v573 = vadd.f32 %v571, %v572
      %v574 = vrcp.pop %v546
      %v575 = vrcp.pop %v555
      %v576 = vrcp.pop %v564
      %v577 = vrcp.pop %v573
      %v578 = vmul.f32 %v523, %v574
      %v579 = vmul.f32 %v525, %v574
      %v580 = vmul.f32 %v527, %v575
      %v581 = vmul.f32 %v529, %v575
      %v582 = vmul.f32 %v531, %v576
      %v583 = vmul.f32 %v533, %v576
      %v584 = vmul.f32 %v535, %v577
      %v585 = vmul.f32 %v537, %v577
      %v586 = vpack.c.bf16 %v579, %v578
      %v587 = vpack.c.bf16 %v581, %v580
      %v588 = vpack.c.bf16 %v583, %v582
      %v589 = vpack.c.bf16 %v585, %v584
      %v591 = vsel %vm477, %v586, 0
      %593 = vmatprep.subr.bf16.mxu0 0
      %594 = vmatpush1.bf16.msra.mxu0 %v309
      %595 = vmatprep.subr.bf16.mxu0 0
      %596 = vmatpush1.bf16.msra.mxu0 0
      %597 = vmatprep.subr.bf16.mxu0 0
      %598 = vmatpush1.bf16.msra.mxu0 0
      %599 = vmatprep.subr.bf16.mxu0 0
      %600 = vmatpush1.bf16.msra.mxu0 0
      %601 = vmatprep.subr.bf16.mxu0 0
      %602 = vmatpush1.bf16.msra.mxu0 0
      %603 = vmatprep.subr.bf16.mxu0 0
      %604 = vmatpush1.bf16.msra.mxu0 0
      %605 = vmatprep.subr.bf16.mxu0 0
      %606 = vmatpush1.bf16.msra.mxu0 0
      %607 = vmatprep.subr.bf16.mxu0 0
      %608 = vmatpush1.bf16.msra.mxu0 0
      %609 = vmatprep.subr.bf16.mxu0 0
      %610 = vmatpush1.bf16.msra.mxu0 0
      %611 = vmatprep.subr.bf16.mxu0 0
      %612 = vmatpush1.bf16.msra.mxu0 0
      %613 = vmatprep.subr.bf16.mxu0 0
      %614 = vmatpush1.bf16.msra.mxu0 0
      %615 = vmatprep.subr.bf16.mxu0 0
      %616 = vmatpush1.bf16.msra.mxu0 0
      %617 = vmatprep.subr.bf16.mxu0 0
      %618 = vmatpush1.bf16.msra.mxu0 0
      %619 = vmatprep.subr.bf16.mxu0 0
      %620 = vmatpush1.bf16.msra.mxu0 0
      %621 = vmatprep.subr.bf16.mxu0 0
      %622 = vmatpush1.bf16.msra.mxu0 0
      %623 = vmatprep.subr.bf16.mxu0 0
      %624 = vmatpush1.bf16.msra.mxu0 0
      %625 = vmatprep.mubr.bf16.mxu0 0
      %626 = vmatmul.mubr.bf16.gmra.mrb[0].mxu0 %v591
      %v627 = vpop.f32.mrb[0].mxu0
      %v628 = vadd.f32 %v289, %v627
      %v629 = vpop.f32.mrb[0].mxu0
      %v630 = vpop.f32.mrb[0].mxu0
      %v631 = vadd.f32 %v290, %v630
      %v632 = vpop.f32.mrb[0].mxu0
      %633 = vdwg.mxu0
      %v635 = vsel %vm477, %v587, 0
      %637 = vmatprep.subr.bf16.mxu0 0
      %638 = vmatpush1.bf16.msra.mxu0 %v310
      %639 = vmatprep.subr.bf16.mxu0 0
      %640 = vmatpush1.bf16.msra.mxu0 0
      %641 = vmatprep.subr.bf16.mxu0 0
      %642 = vmatpush1.bf16.msra.mxu0 0
      %643 = vmatprep.subr.bf16.mxu0 0
      %644 = vmatpush1.bf16.msra.mxu0 0
      %645 = vmatprep.subr.bf16.mxu0 0
      %646 = vmatpush1.bf16.msra.mxu0 0
      %647 = vmatprep.subr.bf16.mxu0 0
      %648 = vmatpush1.bf16.msra.mxu0 0
      %649 = vmatprep.subr.bf16.mxu0 0
      %650 = vmatpush1.bf16.msra.mxu0 0
      %651 = vmatprep.subr.bf16.mxu0 0
      %652 = vmatpush1.bf16.msra.mxu0 0
      %653 = vmatprep.subr.bf16.mxu0 0
      %654 = vmatpush1.bf16.msra.mxu0 0
      %655 = vmatprep.subr.bf16.mxu0 0
      %656 = vmatpush1.bf16.msra.mxu0 0
      %657 = vmatprep.subr.bf16.mxu0 0
      %658 = vmatpush1.bf16.msra.mxu0 0
      %659 = vmatprep.subr.bf16.mxu0 0
      %660 = vmatpush1.bf16.msra.mxu0 0
      %661 = vmatprep.subr.bf16.mxu0 0
      %662 = vmatpush1.bf16.msra.mxu0 0
      %663 = vmatprep.subr.bf16.mxu0 0
      %664 = vmatpush1.bf16.msra.mxu0 0
      %665 = vmatprep.subr.bf16.mxu0 0
      %666 = vmatpush1.bf16.msra.mxu0 0
      %667 = vmatprep.subr.bf16.mxu0 0
      %668 = vmatpush1.bf16.msra.mxu0 0
      %669 = vmatprep.mubr.bf16.mxu0 0
      %670 = vmatmul.mubr.bf16.gmra.mrb[0].mxu0 %v635
      %v671 = vpop.f32.mrb[0].mxu0
      %v672 = vadd.f32 %v291, %v671
      %v673 = vpop.f32.mrb[0].mxu0
      %v674 = vpop.f32.mrb[0].mxu0
      %v675 = vadd.f32 %v292, %v674
      %v676 = vpop.f32.mrb[0].mxu0
      %677 = vdwg.mxu0
      %v679 = vsel %vm477, %v588, 0
      %681 = vmatprep.subr.bf16.mxu0 0
      %682 = vmatpush1.bf16.msra.mxu0 %v311
      %683 = vmatprep.subr.bf16.mxu0 0
      %684 = vmatpush1.bf16.msra.mxu0 0
      %685 = vmatprep.subr.bf16.mxu0 0
      %686 = vmatpush1.bf16.msra.mxu0 0
      %687 = vmatprep.subr.bf16.mxu0 0
      %688 = vmatpush1.bf16.msra.mxu0 0
      %689 = vmatprep.subr.bf16.mxu0 0
      %690 = vmatpush1.bf16.msra.mxu0 0
      %691 = vmatprep.subr.bf16.mxu0 0
      %692 = vmatpush1.bf16.msra.mxu0 0
      %693 = vmatprep.subr.bf16.mxu0 0
      %694 = vmatpush1.bf16.msra.mxu0 0
      %695 = vmatprep.subr.bf16.mxu0 0
      %696 = vmatpush1.bf16.msra.mxu0 0
      %697 = vmatprep.subr.bf16.mxu0 0
      %698 = vmatpush1.bf16.msra.mxu0 0
      %699 = vmatprep.subr.bf16.mxu0 0
      %700 = vmatpush1.bf16.msra.mxu0 0
      %701 = vmatprep.subr.bf16.mxu0 0
      %702 = vmatpush1.bf16.msra.mxu0 0
      %703 = vmatprep.subr.bf16.mxu0 0
      %704 = vmatpush1.bf16.msra.mxu0 0
      %705 = vmatprep.subr.bf16.mxu0 0
      %706 = vmatpush1.bf16.msra.mxu0 0
      %707 = vmatprep.subr.bf16.mxu0 0
      %708 = vmatpush1.bf16.msra.mxu0 0
      %709 = vmatprep.subr.bf16.mxu0 0
      %710 = vmatpush1.bf16.msra.mxu0 0
      %711 = vmatprep.subr.bf16.mxu0 0
      %712 = vmatpush1.bf16.msra.mxu0 0
      %713 = vmatprep.mubr.bf16.mxu0 0
      %714 = vmatmul.mubr.bf16.gmra.mrb[0].mxu0 %v679
      %v715 = vpop.f32.mrb[0].mxu0
      %v716 = vadd.f32 %v293, %v715
      %v717 = vpop.f32.mrb[0].mxu0
      %v718 = vpop.f32.mrb[0].mxu0
      %v719 = vadd.f32 %v294, %v718
      %v720 = vpop.f32.mrb[0].mxu0
      %721 = vdwg.mxu0
      %v723 = vsel %vm477, %v589, 0
      %725 = vmatprep.subr.bf16.mxu0 0
      %726 = vmatpush1.bf16.msra.mxu0 %v312
      %727 = vmatprep.subr.bf16.mxu0 0
      %728 = vmatpush1.bf16.msra.mxu0 0
      %729 = vmatprep.subr.bf16.mxu0 0
      %730 = vmatpush1.bf16.msra.mxu0 0
      %731 = vmatprep.subr.bf16.mxu0 0
      %732 = vmatpush1.bf16.msra.mxu0 0
      %733 = vmatprep.subr.bf16.mxu0 0
      %734 = vmatpush1.bf16.msra.mxu0 0
      %735 = vmatprep.subr.bf16.mxu0 0
      %736 = vmatpush1.bf16.msra.mxu0 0
      %737 = vmatprep.subr.bf16.mxu0 0
      %738 = vmatpush1.bf16.msra.mxu0 0
      %739 = vmatprep.subr.bf16.mxu0 0
      %740 = vmatpush1.bf16.msra.mxu0 0
      %741 = vmatprep.subr.bf16.mxu0 0
      %742 = vmatpush1.bf16.msra.mxu0 0
      %743 = vmatprep.subr.bf16.mxu0 0
      %744 = vmatpush1.bf16.msra.mxu0 0
      %745 = vmatprep.subr.bf16.mxu0 0
      %746 = vmatpush1.bf16.msra.mxu0 0
      %747 = vmatprep.subr.bf16.mxu0 0
      %748 = vmatpush1.bf16.msra.mxu0 0
      %749 = vmatprep.subr.bf16.mxu0 0
      %750 = vmatpush1.bf16.msra.mxu0 0
      %751 = vmatprep.subr.bf16.mxu0 0
      %752 = vmatpush1.bf16.msra.mxu0 0
      %753 = vmatprep.subr.bf16.mxu0 0
      %754 = vmatpush1.bf16.msra.mxu0 0
      %755 = vmatprep.subr.bf16.mxu0 0
      %756 = vmatpush1.bf16.msra.mxu0 0
      %757 = vmatprep.mubr.bf16.mxu0 0
      %758 = vmatmul.mubr.bf16.gmra.mrb[0].mxu0 %v723
      %v759 = vpop.f32.mrb[0].mxu0
      %v760 = vadd.f32 %v295, %v759
      %v761 = vpop.f32.mrb[0].mxu0
      %v762 = vpop.f32.mrb[0].mxu0
      %v763 = vadd.f32 %v296, %v762
      %v764 = vpop.f32.mrb[0].mxu0
      %765 = vdwg.mxu0
      %v766 = vpack.c.bf16 %v631, %v628
      %v767 = vpack.c.bf16 %v675, %v672
      %v768 = vpack.c.bf16 %v719, %v716
      %v769 = vpack.c.bf16 %v763, %v760
      %v774 = vunpack.c.l.b16 %v766
      %v775 = vunpack.c.h.b16 %v766
      %v776 = vunpack.c.l.b16 %v767
      %v777 = vunpack.c.h.b16 %v767
      %v778 = vunpack.c.l.b16 %v768
      %v779 = vunpack.c.h.b16 %v768
      %v780 = vunpack.c.l.b16 %v769
      %v781 = vunpack.c.h.b16 %v769
      %v782 = vpack.c.b16 %v774, %v774
      %v783 = vpack.c.b16 %v775, %v775
      %v784 = vpack.c.b16 %v776, %v776
      %v785 = vpack.c.b16 %v777, %v777
      %v786 = vpack.c.b16 %v778, %v778
      %v787 = vpack.c.b16 %v779, %v779
      %v788 = vpack.c.b16 %v780, %v780
      %v789 = vpack.c.b16 %v781, %v781
      %798 = vst [vmem:[%s242] sm:$0xf] %v782
      %799 = vst [vmem:[%s242 + $0x4] sm:$0xf] %v783
      %800 = vst [vmem:[%s242 + $0x8] sm:$0xf] %v784
      %801 = vst [vmem:[%s242 + $0xc] sm:$0xf] %v785
      %802 = vst [vmem:[%s242 + $0x10] sm:$0xf] %v786
      %803 = vst [vmem:[%s242 + $0x14] sm:$0xf] %v787
      %804 = vst [vmem:[%s242 + $0x18] sm:$0xf] %v788
      %805 = vst [vmem:[%s242 + $0x1c] sm:$0xf] %v789
      %v806 = vadd.f32 %v628, %v631
      %v807 = vadd.f32 %v806, %v672
      %v808 = vadd.f32 %v807, %v675
      %v809 = vadd.f32 %v808, %v716
      %v810 = vadd.f32 %v809, %v719
      %v811 = vadd.f32 %v810, %v760
      %v812 = vadd.f32 %v811, %v763
      %v813 = vrot.slane %v812, 4
      %v814 = vadd.f32 %v812, %v813
      %v815 = vrot.slane %v814, 2
      %v816 = vadd.f32 %v814, %v815
      %v817 = vrot.slane %v816, 1
      %v818 = vadd.f32 %v816, %v817
      %819 = vst [vmem:[%s246] sm:$0x1] %v818
      %v820 = vmul.f32 %v628, %v628
      %v821 = vmul.f32 %v631, %v631
      %v822 = vmul.f32 %v672, %v672
      %v823 = vmul.f32 %v675, %v675
      %v824 = vmul.f32 %v716, %v716
      %v825 = vmul.f32 %v719, %v719
      %v826 = vmul.f32 %v760, %v760
      %v827 = vmul.f32 %v763, %v763
      %v828 = vadd.f32 %v820, %v821
      %v829 = vadd.f32 %v828, %v822
      %v830 = vadd.f32 %v829, %v823
      %v831 = vadd.f32 %v830, %v824
      %v832 = vadd.f32 %v831, %v825
      %v833 = vadd.f32 %v832, %v826
      %v834 = vadd.f32 %v833, %v827
      %v835 = vrot.slane %v834, 4
      %v836 = vadd.f32 %v834, %v835
      %v837 = vrot.slane %v836, 2
      %v838 = vadd.f32 %v836, %v837
      %v839 = vrot.slane %v838, 1
      %v840 = vadd.f32 %v838, %v839
      %841 = vst [vmem:[%s249] sm:$0x1] %v840
      %s842 = smul.u32 4, %s17
      %p843 = scmp.lt.s32.totalorder %s842, 15
      %s844 = scalar_select %p843, %s842, 15
      %s845 = smul.addr %s844, 2
      %s846 = smul.addr %s845, 4
      %s847 = scalar_lea.vmem %s3, %s846
      %p848 = scmp.lt.s32.totalorder %s17, 3
      %s849 = scalar_select %p848, %s17, 3
      %s850 = scalar_lea.vmem %s4, %s849
      %p851 = scmp.lt.s32.totalorder %s17, 3
      %s852 = scalar_select %p851, %s17, 3
      %s853 = scalar_lea.vmem %s5, %s852
      // Predicated region
      $region33: #{_lambda_.6} parent=31 // pred_check
        %p854 = pneg %p103
      $region34: #{_lambda_.6} parent=31 // pred_check_branch
        %856 = sbr.rel (%p854) target = $region36
      $region35: #{_lambda_.6} parent=31 // pred_region
        %s857 = smul.u32 4, %s17
      $region36: #{_lambda_.6} parent=31 // pred_fallthru
        _
      // Predicated region
      $region37: #{_lambda_.6} parent=31 // pred_check
        %p858 = pneg %p129
      $region38: #{_lambda_.6} parent=31 // pred_check_branch
        %860 = sbr.rel (%p858) target = $region40
      $region39: #{_lambda_.6} parent=31 // pred_region
        _
      $region40: #{_lambda_.6} parent=31 // pred_fallthru
        _
      // Predicated region
      $region41: #{_lambda_.6} parent=31 // pred_check
        %p861 = pneg %p155
      $region42: #{_lambda_.6} parent=31 // pred_check_branch
        %863 = sbr.rel (%p861) target = $region44
      $region43: #{_lambda_.6} parent=31 // pred_region
        _
      $region44: #{_lambda_.6} parent=31 // pred_fallthru
        _
    $region32: #{_lambda_.6} parent=5 // pred_fallthru
      _
    %p864 = scmp.le.s32.totalorder 2, %s12
    // Predicated region
    $region45: #{_lambda_.6} parent=5 // pred_check
      %p865 = pneg %p864
    $region46: #{_lambda_.6} parent=5 // pred_check_branch
      %867 = sbr.rel (%p865) target = $region48
    $region47: #{_lambda_.6} parent=5 // pred_region
      %s868 = ssub.s32 %s12, 2
      // Predicated region
      $region49: #{_lambda_.6} parent=47 // pred_check
        %p869 = pneg %p109
      $region50: #{_lambda_.6} parent=47 // pred_check_branch
        %871 = sbr.rel (%p869) target = $region52
      $region51: #{_lambda_.6} parent=47 // pred_region
        %s872 = smul.u32 4, %s18
        %p873 = scmp.lt.s32.totalorder %s872, 15
        %s874 = scalar_select %p873, %s872, 15
        %s875 = smul.addr %s874, 2
        %s876 = smul.addr %s875, 4
        %s877 = scalar_lea.vmem %s3, %s876
      $region52: #{_lambda_.6} parent=47 // pred_fallthru
        _
      // Predicated region
      $region53: #{_lambda_.6} parent=47 // pred_check
        %p878 = pneg %p135
      $region54: #{_lambda_.6} parent=47 // pred_check_branch
        %880 = sbr.rel (%p878) target = $region56
      $region55: #{_lambda_.6} parent=47 // pred_region
        %p881 = scmp.lt.s32.totalorder %s18, 3
        %s882 = scalar_select %p881, %s18, 3
        %s883 = scalar_lea.vmem %s4, %s882
      $region56: #{_lambda_.6} parent=47 // pred_fallthru
        _
      // Predicated region
      $region57: #{_lambda_.6} parent=47 // pred_check
        %p884 = pneg %p161
      $region58: #{_lambda_.6} parent=47 // pred_check_branch
        %886 = sbr.rel (%p884) target = $region60
      $region59: #{_lambda_.6} parent=47 // pred_region
        %p887 = scmp.lt.s32.totalorder %s18, 3
        %s888 = scalar_select %p887, %s18, 3
        %s889 = scalar_lea.vmem %s5, %s888
      $region60: #{_lambda_.6} parent=47 // pred_fallthru
        _
    $region48: #{_lambda_.6} parent=5 // pred_fallthru
      _
  $region6: #{_lambda_.6} parent=0 // loop_footer
    %s16 = sadd.s32 1, %s12
  $region7: #{_lambda_.6} parent=0 // loop_footer_branch
    %11 = sbr.rel target = $region3
  $region8: #{_lambda_.6} parent=0 // loop_exit
    _

// kernel: _lambda_.5
$region0: #{_lambda_.5}
  #allocation0 [shape = 'u32[]', space=smem, size = 0x4, offset = 0x4, fixed_abs, tag = 'smem constant byte address 0x4 - core index']
  #allocation1 [shape = 'u32[144,128]{1,0:T(1,128)}', space=vmem, size = 0x12000, scoped, tag = 'internal scratch']
  %s0 = inlined_call_operand.vmem [shape: f32[1,128], index: 0, kind: input, shape index: {}]
  %s1 = inlined_call_operand.vmem [shape: f32[1,128], index: 1, kind: input, shape index: {}]
  %s2 = inlined_call_operand.vmem [shape: bf16[16,16,128], index: 2, kind: input, shape index: {}]
  %s3 = inlined_call_operand.vmem [shape: bf16[128,128], index: 3, kind: input, shape index: {}]
  %s4 = inlined_call_operand.vmem [shape: f32[1,128], index: 4, kind: input, shape index: {}]
  %s5 = inlined_call_operand.vmem [shape: bf16[128,128], index: 5, kind: input, shape index: {}]
  %s6 = inlined_call_operand.vmem [shape: f32[1,128], index: 6, kind: input, shape index: {}]
  %s7 = inlined_call_operand.vmem [shape: bf16[16,16,128], index: 7, kind: output, shape index: {0}]
  %s8 = inlined_call_operand.vmem [shape: f32[4,1,128], index: 8, kind: output, shape index: {1}]
  %s9 = inlined_call_operand.vmem [shape: f32[4,1,128], index: 9, kind: output, shape index: {2}]
  %10 = xla_tuple %s7, %s8, %s9
  %s11 = sld [smem:[#allocation0]]
  $region77: #{_lambda_.5} parent=0
    _
  %s13 = ssub.s32 1, %s11
  %s14 = scalar_select 0, %s13, %s11
  loop: start=0, step=1, limit=6
  $region2: #{_lambda_.5} parent=0 // loop_pre_header
    _
  $region3: #{_lambda_.5} parent=0 // loop_header
    %s16 = sphi 0, %s20
    %p17 = scmp.ge.s32.totalorder %s16, 6
    %s24 = sphi 0, %s24
    %s26 = sphi 0, %s24
    %s27 = sphi 0, %s26
    %s41 = sphi 0, %s27
    %s45 = sphi 0, %s45
    %s47 = sphi 0, %s45
    %s48 = sphi 0, %s47
    %s62 = sphi 0, %s48
    %s68 = sphi 0, %s70
    %s71 = sphi 0, %s68
    %s72 = sphi 0, %s71
    %s88 = sphi 0, %s72
    %s92 = sphi 0, %s92
    %s94 = sphi 0, %s92
    %s95 = sphi 0, %s94
    %s109 = sphi 0, %s95
    %s113 = sphi 0, %s113
    %s115 = sphi 0, %s113
    %s116 = sphi 0, %s115
    %s130 = sphi 0, %s116
    %s134 = sphi 0, %s134
    %s136 = sphi 0, %s134
    %s137 = sphi 0, %s136
    %s151 = sphi 0, %s137
    %s155 = sphi 0, %s155
    %s157 = sphi 0, %s155
    %s158 = sphi 0, %s157
    %s172 = sphi 0, %s158
    %s178 = sphi 0, %s180
    %s181 = sphi 0, %s178
    %s182 = sphi 0, %s181
    %s198 = sphi 0, %s182
    %s204 = sphi 0, %s206
    %s207 = sphi 0, %s204
    %s208 = sphi 0, %s207
    %s224 = sphi 0, %s208
    %s230 = sphi 0, %s232
    %s233 = sphi 0, %s230
    %s234 = sphi 0, %s233
    %s250 = sphi 0, %s234
  $region4: #{_lambda_.5} parent=0 // loop_header_branch
    %19 = sbr.rel (%p17) target = $region8
  $region5: #{_lambda_.5} parent=0 // loop_body
    %s21 = ssub.s32 %s16, 1
    %s22 = ssub.s32 %s16, 2
    %s23 = sadd.s32 %s16, 1
    %s25 = sadd.s32 %s24, 1
    %p28 = scmp.eq.s32.totalorder %s16, 3
    %p29 = scmp.ne.s32.totalorder %s24, %s26
    %p30 = scmp.eq.s32.totalorder %s16, 0
    %p31 = por %p29, %p30
    %p32 = scmp.ne.s32.totalorder %s24, %s26
    %p33 = scmp.eq.s32.totalorder %s21, 3
    %p34 = por %p32, %p33
    %p35 = scmp.ne.s32.totalorder %s26, %s27
    %p36 = scmp.eq.s32.totalorder %s21, 0
    %p37 = por %p35, %p36
    %p38 = scmp.ne.s32.totalorder %s26, %s27
    %p39 = scmp.eq.s32.totalorder %s22, 3
    %p40 = por %p38, %p39
    %p42 = scmp.ne.s32.totalorder %s27, %s41
    %p43 = scmp.eq.s32.totalorder %s22, 0
    %p44 = por %p42, %p43
    %s46 = sadd.s32 %s45, 1
    %p49 = scmp.eq.s32.totalorder %s16, 3
    %p50 = scmp.ne.s32.totalorder %s45, %s47
    %p51 = scmp.eq.s32.totalorder %s16, 0
    %p52 = por %p50, %p51
    %p53 = scmp.ne.s32.totalorder %s45, %s47
    %p54 = scmp.eq.s32.totalorder %s21, 3
    %p55 = por %p53, %p54
    %p56 = scmp.ne.s32.totalorder %s47, %s48
    %p57 = scmp.eq.s32.totalorder %s21, 0
    %p58 = por %p56, %p57
    %p59 = scmp.ne.s32.totalorder %s47, %s48
    %p60 = scmp.eq.s32.totalorder %s22, 3
    %p61 = por %p59, %p60
    %p63 = scmp.ne.s32.totalorder %s48, %s62
    %p64 = scmp.eq.s32.totalorder %s22, 0
    %p65 = por %p63, %p64
    %s66 = ssub.s32 %s16, %s23
    %p67 = scmp.eq.s32.totalorder %s66, 0
    %s69 = sadd.s32 %s68, 1
    %s70 = scalar_select %p67, %s68, %s69
    %p73 = pneg %p67
    %p74 = scmp.eq.s32.totalorder %s16, 3
    %p75 = por %p73, %p74
    %p76 = scmp.ne.s32.totalorder %s68, %s71
    %p77 = scmp.eq.s32.totalorder %s16, 0
    %p78 = por %p76, %p77
    %p79 = scmp.ne.s32.totalorder %s68, %s71
    %p80 = scmp.eq.s32.totalorder %s21, 3
    %p81 = por %p79, %p80
    %p82 = scmp.ne.s32.totalorder %s71, %s72
    %p83 = scmp.eq.s32.totalorder %s21, 0
    %p84 = por %p82, %p83
    %p85 = scmp.ne.s32.totalorder %s71, %s72
    %p86 = scmp.eq.s32.totalorder %s22, 3
    %p87 = por %p85, %p86
    %p89 = scmp.ne.s32.totalorder %s72, %s88
    %p90 = scmp.eq.s32.totalorder %s22, 0
    %p91 = por %p89, %p90
    %s93 = sadd.s32 %s92, 1
    %p96 = scmp.eq.s32.totalorder %s16, 3
    %p97 = scmp.ne.s32.totalorder %s92, %s94
    %p98 = scmp.eq.s32.totalorder %s16, 0
    %p99 = por %p97, %p98
    %p100 = scmp.ne.s32.totalorder %s92, %s94
    %p101 = scmp.eq.s32.totalorder %s21, 3
    %p102 = por %p100, %p101
    %p103 = scmp.ne.s32.totalorder %s94, %s95
    %p104 = scmp.eq.s32.totalorder %s21, 0
    %p105 = por %p103, %p104
    %p106 = scmp.ne.s32.totalorder %s94, %s95
    %p107 = scmp.eq.s32.totalorder %s22, 3
    %p108 = por %p106, %p107
    %p110 = scmp.ne.s32.totalorder %s95, %s109
    %p111 = scmp.eq.s32.totalorder %s22, 0
    %p112 = por %p110, %p111
    %s114 = sadd.s32 %s113, 1
    %p117 = scmp.eq.s32.totalorder %s16, 3
    %p118 = scmp.ne.s32.totalorder %s113, %s115
    %p119 = scmp.eq.s32.totalorder %s16, 0
    %p120 = por %p118, %p119
    %p121 = scmp.ne.s32.totalorder %s113, %s115
    %p122 = scmp.eq.s32.totalorder %s21, 3
    %p123 = por %p121, %p122
    %p124 = scmp.ne.s32.totalorder %s115, %s116
    %p125 = scmp.eq.s32.totalorder %s21, 0
    %p126 = por %p124, %p125
    %p127 = scmp.ne.s32.totalorder %s115, %s116
    %p128 = scmp.eq.s32.totalorder %s22, 3
    %p129 = por %p127, %p128
    %p131 = scmp.ne.s32.totalorder %s116, %s130
    %p132 = scmp.eq.s32.totalorder %s22, 0
    %p133 = por %p131, %p132
    %s135 = sadd.s32 %s134, 1
    %p138 = scmp.eq.s32.totalorder %s16, 3
    %p139 = scmp.ne.s32.totalorder %s134, %s136
    %p140 = scmp.eq.s32.totalorder %s16, 0
    %p141 = por %p139, %p140
    %p142 = scmp.ne.s32.totalorder %s134, %s136
    %p143 = scmp.eq.s32.totalorder %s21, 3
    %p144 = por %p142, %p143
    %p145 = scmp.ne.s32.totalorder %s136, %s137
    %p146 = scmp.eq.s32.totalorder %s21, 0
    %p147 = por %p145, %p146
    %p148 = scmp.ne.s32.totalorder %s136, %s137
    %p149 = scmp.eq.s32.totalorder %s22, 3
    %p150 = por %p148, %p149
    %p152 = scmp.ne.s32.totalorder %s137, %s151
    %p153 = scmp.eq.s32.totalorder %s22, 0
    %p154 = por %p152, %p153
    %s156 = sadd.s32 %s155, 1
    %p159 = scmp.eq.s32.totalorder %s16, 3
    %p160 = scmp.ne.s32.totalorder %s155, %s157
    %p161 = scmp.eq.s32.totalorder %s16, 0
    %p162 = por %p160, %p161
    %p163 = scmp.ne.s32.totalorder %s155, %s157
    %p164 = scmp.eq.s32.totalorder %s21, 3
    %p165 = por %p163, %p164
    %p166 = scmp.ne.s32.totalorder %s157, %s158
    %p167 = scmp.eq.s32.totalorder %s21, 0
    %p168 = por %p166, %p167
    %p169 = scmp.ne.s32.totalorder %s157, %s158
    %p170 = scmp.eq.s32.totalorder %s22, 3
    %p171 = por %p169, %p170
    %p173 = scmp.ne.s32.totalorder %s158, %s172
    %p174 = scmp.eq.s32.totalorder %s22, 0
    %p175 = por %p173, %p174
    %s176 = ssub.s32 %s16, %s23
    %p177 = scmp.eq.s32.totalorder %s176, 0
    %s179 = sadd.s32 %s178, 1
    %s180 = scalar_select %p177, %s178, %s179
    %p183 = pneg %p177
    %p184 = scmp.eq.s32.totalorder %s16, 3
    %p185 = por %p183, %p184
    %p186 = scmp.ne.s32.totalorder %s178, %s181
    %p187 = scmp.eq.s32.totalorder %s16, 0
    %p188 = por %p186, %p187
    %p189 = scmp.ne.s32.totalorder %s178, %s181
    %p190 = scmp.eq.s32.totalorder %s21, 3
    %p191 = por %p189, %p190
    %p192 = scmp.ne.s32.totalorder %s181, %s182
    %p193 = scmp.eq.s32.totalorder %s21, 0
    %p194 = por %p192, %p193
    %p195 = scmp.ne.s32.totalorder %s181, %s182
    %p196 = scmp.eq.s32.totalorder %s22, 3
    %p197 = por %p195, %p196
    %p199 = scmp.ne.s32.totalorder %s182, %s198
    %p200 = scmp.eq.s32.totalorder %s22, 0
    %p201 = por %p199, %p200
    %s202 = ssub.s32 %s16, %s23
    %p203 = scmp.eq.s32.totalorder %s202, 0
    %s205 = sadd.s32 %s204, 1
    %s206 = scalar_select %p203, %s204, %s205
    %p209 = pneg %p203
    %p210 = scmp.eq.s32.totalorder %s16, 3
    %p211 = por %p209, %p210
    %p212 = scmp.ne.s32.totalorder %s204, %s207
    %p213 = scmp.eq.s32.totalorder %s16, 0
    %p214 = por %p212, %p213
    %p215 = scmp.ne.s32.totalorder %s204, %s207
    %p216 = scmp.eq.s32.totalorder %s21, 3
    %p217 = por %p215, %p216
    %p218 = scmp.ne.s32.totalorder %s207, %s208
    %p219 = scmp.eq.s32.totalorder %s21, 0
    %p220 = por %p218, %p219
    %p221 = scmp.ne.s32.totalorder %s207, %s208
    %p222 = scmp.eq.s32.totalorder %s22, 3
    %p223 = por %p221, %p222
    %p225 = scmp.ne.s32.totalorder %s208, %s224
    %p226 = scmp.eq.s32.totalorder %s22, 0
    %p227 = por %p225, %p226
    %s228 = ssub.s32 %s16, %s23
    %p229 = scmp.eq.s32.totalorder %s228, 0
    %s231 = sadd.s32 %s230, 1
    %s232 = scalar_select %p229, %s230, %s231
    %p235 = pneg %p229
    %p236 = scmp.eq.s32.totalorder %s16, 3
    %p237 = por %p235, %p236
    %p238 = scmp.ne.s32.totalorder %s230, %s233
    %p239 = scmp.eq.s32.totalorder %s16, 0
    %p240 = por %p238, %p239
    %p241 = scmp.ne.s32.totalorder %s230, %s233
    %p242 = scmp.eq.s32.totalorder %s21, 3
    %p243 = por %p241, %p242
    %p244 = scmp.ne.s32.totalorder %s233, %s234
    %p245 = scmp.eq.s32.totalorder %s21, 0
    %p246 = por %p244, %p245
    %p247 = scmp.ne.s32.totalorder %s233, %s234
    %p248 = scmp.eq.s32.totalorder %s22, 3
    %p249 = por %p247, %p248
    %p251 = scmp.ne.s32.totalorder %s234, %s250
    %p252 = scmp.eq.s32.totalorder %s22, 0
    %p253 = por %p251, %p252
    %p254 = scmp.le.s32.totalorder 1, %s16
    %p255 = scmp.lt.s32.totalorder %s16, 5
    %p256 = pnand %p254, %p255
    %p257 = pneg %p256
    // Predicated region
    $region9: #{_lambda_.5} parent=5 // pred_check
      _
    $region10: #{_lambda_.5} parent=5 // pred_check_branch
      %259 = sbr.rel (%p256) target = $region12
    $region11: #{_lambda_.5} parent=5 // pred_region
      %s260 = ssub.s32 %s16, 1
      // Predicated region
      $region13: #{_lambda_.5} parent=11 // pred_check
        %p261 = pneg %p37
      $region14: #{_lambda_.5} parent=11 // pred_check_branch
        %263 = sbr.rel (%p261) target = $region16
      $region15: #{_lambda_.5} parent=11 // pred_region
        _
      $region16: #{_lambda_.5} parent=11 // pred_fallthru
        _
      // Predicated region
      $region17: #{_lambda_.5} parent=11 // pred_check
        %p264 = pneg %p58
      $region18: #{_lambda_.5} parent=11 // pred_check_branch
        %266 = sbr.rel (%p264) target = $region20
      $region19: #{_lambda_.5} parent=11 // pred_region
        _
      $region20: #{_lambda_.5} parent=11 // pred_fallthru
        _
      // Predicated region
      $region21: #{_lambda_.5} parent=11 // pred_check
        %p267 = pneg %p105
      $region22: #{_lambda_.5} parent=11 // pred_check_branch
        %269 = sbr.rel (%p267) target = $region24
      $region23: #{_lambda_.5} parent=11 // pred_region
        _
      $region24: #{_lambda_.5} parent=11 // pred_fallthru
        _
      // Predicated region
      $region25: #{_lambda_.5} parent=11 // pred_check
        %p270 = pneg %p126
      $region26: #{_lambda_.5} parent=11 // pred_check_branch
        %272 = sbr.rel (%p270) target = $region28
      $region27: #{_lambda_.5} parent=11 // pred_region
        _
      $region28: #{_lambda_.5} parent=11 // pred_fallthru
        _
      // Predicated region
      $region29: #{_lambda_.5} parent=11 // pred_check
        %p273 = pneg %p147
      $region30: #{_lambda_.5} parent=11 // pred_check_branch
        %275 = sbr.rel (%p273) target = $region32
      $region31: #{_lambda_.5} parent=11 // pred_region
        _
      $region32: #{_lambda_.5} parent=11 // pred_fallthru
        _
      // Predicated region
      $region33: #{_lambda_.5} parent=11 // pred_check
        %p276 = pneg %p168
      $region34: #{_lambda_.5} parent=11 // pred_check_branch
        %278 = sbr.rel (%p276) target = $region36
      $region35: #{_lambda_.5} parent=11 // pred_region
        _
      $region36: #{_lambda_.5} parent=11 // pred_fallthru
        _
    $region12: #{_lambda_.5} parent=5 // pred_fallthru
      _
    %p279 = scmp.lt.s32.totalorder %s16, 4
    // Predicated region
    $region37: #{_lambda_.5} parent=5 // pred_check
      %p280 = pneg %p279
    $region38: #{_lambda_.5} parent=5 // pred_check_branch
      %282 = sbr.rel (%p280) target = $region40
    $region39: #{_lambda_.5} parent=5 // pred_region
      // Predicated region
      $region41: #{_lambda_.5} parent=39 // pred_check
        %p283 = pneg %p78
      $region42: #{_lambda_.5} parent=39 // pred_check_branch
        %285 = sbr.rel (%p283) target = $region44
      $region43: #{_lambda_.5} parent=39 // pred_region
        %s286 = smul.u32 4, %s16
        %p287 = scmp.lt.s32.totalorder %s286, 15
        %s288 = scalar_select %p287, %s286, 15
        %s289 = smul.addr %s288, 2
        %s290 = smul.addr %s289, 4
        %s291 = scalar_lea.vmem %s2, %s290
        %s292 = smul.u32 4, %s16
      $region44: #{_lambda_.5} parent=39 // pred_fallthru
        _
    $region40: #{_lambda_.5} parent=5 // pred_fallthru
      _
    %p293 = scmp.le.s32.totalorder 1, %s16
    %p294 = scmp.lt.s32.totalorder %s16, 5
    %p295 = pnand %p293, %p294
    %p296 = pneg %p295
    // Predicated region
    $region45: #{_lambda_.5} parent=5 // pred_check
      _
    $region46: #{_lambda_.5} parent=5 // pred_check_branch
      %298 = sbr.rel (%p295) target = $region48
    $region47: #{_lambda_.5} parent=5 // pred_region
      %s299 = ssub.s32 %s16, 1
      %p300 = pneg %p37
      %p301 = pneg %p34
      %p302 = pneg %p58
      %p303 = pneg %p55
      %s304 = smul.u32 4, %s21
      %p305 = scmp.lt.s32.totalorder %s304, 15
      %s306 = scalar_select %p305, %s304, 15
      %s307 = smul.addr %s306, 2
      %s308 = smul.addr %s307, 4
      %s309 = scalar_lea.vmem %s2, %s308
      %p310 = pneg %p84
      %p311 = pneg %p81
      %p312 = pneg %p105
      %p313 = pneg %p102
      %p314 = pneg %p126
      %p315 = pneg %p123
      %p316 = pneg %p147
      %p317 = pneg %p144
      %p318 = pneg %p168
      %p319 = pneg %p165
      %p320 = pneg %p194
      %p321 = pneg %p191
      %s322 = smul.u32 4, %s21
      %p323 = scmp.lt.s32.totalorder %s322, 15
      %s324 = scalar_select %p323, %s322, 15
      %s325 = smul.addr %s324, 2
      %s326 = smul.addr %s325, 4
      %s327 = scalar_lea.vmem %s7, %s326
      %p328 = pneg %p220
      %p329 = pneg %p217
      %p330 = scmp.lt.s32.totalorder %s21, 3
      %s331 = scalar_select %p330, %s21, 3
      %s332 = scalar_lea.vmem %s8, %s331
      %p333 = pneg %p246
      %p334 = pneg %p243
      %p335 = scmp.lt.s32.totalorder %s21, 3
      %s336 = scalar_select %p335, %s21, 3
      %s337 = scalar_lea.vmem %s9, %s336
      %s338 = smul.u32 4, %s21
      %p339 = scmp.lt.s32.totalorder %s338, 15
      %s340 = scalar_select %p339, %s338, 15
      %s341 = smul.addr %s340, 2
      %s342 = smul.addr %s341, 4
      %s343 = scalar_lea.vmem %s2, %s342
      %s344 = smul.u32 4, %s21
      %s345 = smul.u32 4, %s21
      %p346 = scmp.lt.s32.totalorder %s345, 15
      %s347 = scalar_select %p346, %s345, 15
      %s348 = smul.addr %s347, 2
      %s349 = smul.addr %s348, 4
      %s350 = scalar_lea.vmem %s7, %s349
      %s351 = smul.u32 4, %s21
      %p352 = scmp.lt.s32.totalorder %s21, 3
      %s353 = scalar_select %p352, %s21, 3
      %s354 = scalar_lea.vmem %s8, %s353
      %p355 = scmp.lt.s32.totalorder %s21, 3
      %s356 = scalar_select %p355, %s21, 3
      %s357 = scalar_lea.vmem %s9, %s356
      %v359 = vld [vmem:[%s343] sm:$0xf]
      %v360 = vld [vmem:[%s343 + $0x4] sm:$0xf]
      %v361 = vld [vmem:[%s343 + $0x8] sm:$0xf]
      %v362 = vld [vmem:[%s343 + $0xc] sm:$0xf]
      %v363 = vld [vmem:[%s343 + $0x10] sm:$0xf]
      %v364 = vld [vmem:[%s343 + $0x14] sm:$0xf]
      %v365 = vld [vmem:[%s343 + $0x18] sm:$0xf]
      %v366 = vld [vmem:[%s343 + $0x1c] sm:$0xf]
      %v367 = vunpack.c.l.bf16 %v359
      %v368 = vunpack.c.l.bf16 %v360
      %v369 = vunpack.c.l.bf16 %v361
      %v370 = vunpack.c.l.bf16 %v362
      %v371 = vunpack.c.l.bf16 %v363
      %v372 = vunpack.c.l.bf16 %v364
      %v373 = vunpack.c.l.bf16 %v365
      %v374 = vunpack.c.l.bf16 %v366
      %v375 = vld [vmem:[%s0] sm:$0x1]
      %v376 = vld [vmem:[%s1] sm:$0x1]
      %v378 = vlaneseq
      %v379 = vshrl.u32 %v378, 7
      %v380 = vsub.s32 0, %v379
      %v381 = vrot.slane %v375, %v380
      %v383 = vmul.f32 %v367, %v381
      %v384 = vmul.f32 %v368, %v381
      %v385 = vmul.f32 %v369, %v381
      %v386 = vmul.f32 %v370, %v381
      %v387 = vmul.f32 %v371, %v381
      %v388 = vmul.f32 %v372, %v381
      %v389 = vmul.f32 %v373, %v381
      %v390 = vmul.f32 %v374, %v381
      %v392 = vlaneseq
      %v393 = vshrl.u32 %v392, 7
      %v394 = vsub.s32 0, %v393
      %v395 = vrot.slane %v376, %v394
      %v397 = vadd.f32 %v383, %v395
      %v398 = vadd.f32 %v384, %v395
      %v399 = vadd.f32 %v385, %v395
      %v400 = vadd.f32 %v386, %v395
      %v401 = vadd.f32 %v387, %v395
      %v402 = vadd.f32 %v388, %v395
      %v403 = vadd.f32 %v389, %v395
      %v404 = vadd.f32 %v390, %v395
      %v405 = vld [vmem:[%s3] sm:$0xf]
      %v406 = vld [vmem:[%s3 + $0x4] sm:$0xf]
      %v407 = vld [vmem:[%s3 + $0x8] sm:$0xf]
      %v408 = vld [vmem:[%s3 + $0xc] sm:$0xf]
      %v409 = vld [vmem:[%s3 + $0x10] sm:$0xf]
      %v410 = vld [vmem:[%s3 + $0x14] sm:$0xf]
      %v411 = vld [vmem:[%s3 + $0x18] sm:$0xf]
      %v412 = vld [vmem:[%s3 + $0x1c] sm:$0xf]
      %v413 = vld [vmem:[%s3 + $0x20] sm:$0xf]
      %v414 = vld [vmem:[%s3 + $0x24] sm:$0xf]
      %v415 = vld [vmem:[%s3 + $0x28] sm:$0xf]
      %v416 = vld [vmem:[%s3 + $0x2c] sm:$0xf]
      %v417 = vld [vmem:[%s3 + $0x30] sm:$0xf]
      %v418 = vld [vmem:[%s3 + $0x34] sm:$0xf]
      %v419 = vld [vmem:[%s3 + $0x38] sm:$0xf]
      %v420 = vld [vmem:[%s3 + $0x3c] sm:$0xf]
      %v421 = vld [vmem:[%s4] sm:$0x1]
      %v422 = vpack.c.bf16 %v398, %v397
      %v423 = vpack.c.bf16 %v400, %v399
      %v424 = vpack.c.bf16 %v402, %v401
      %v425 = vpack.c.bf16 %v404, %v403
      %v427 = vlaneseq
      %v428 = vshrl.u32 %v427, 7
      %v429 = vsub.s32 0, %v428
      %v430 = vrot.slane %v421, %v429
      %v448 = vunpack.c.l.b16 %v405
      %v449 = vunpack.c.l.b16 %v406
      %v450 = vunpack.c.l.b16 %v407
      %v451 = vunpack.c.l.b16 %v408
      %v452 = vunpack.c.l.b16 %v409
      %v453 = vunpack.c.l.b16 %v410
      %v454 = vunpack.c.l.b16 %v411
      %v455 = vunpack.c.l.b16 %v412
      %v456 = vunpack.c.l.b16 %v413
      %v457 = vunpack.c.l.b16 %v414
      %v458 = vunpack.c.l.b16 %v415
      %v459 = vunpack.c.l.b16 %v416
      %v460 = vunpack.c.l.b16 %v417
      %v461 = vunpack.c.l.b16 %v418
      %v462 = vunpack.c.l.b16 %v419
      %v463 = vunpack.c.l.b16 %v420
      %v464 = vpack.c.b16 %v449, %v448
      %v465 = vpack.c.b16 %v451, %v450
      %v466 = vpack.c.b16 %v453, %v452
      %v467 = vpack.c.b16 %v455, %v454
      %v468 = vpack.c.b16 %v457, %v456
      %v469 = vpack.c.b16 %v459, %v458
      %v470 = vpack.c.b16 %v461, %v460
      %v471 = vpack.c.b16 %v463, %v462
      %480 = vmatprep.subr.bf16.mxu0 0
      %481 = vmatpush1.bf16.msra.mxu0 %v464
      %482 = vmatprep.subr.bf16.mxu0 0
      %483 = vmatpush1.bf16.msra.mxu0 %v465
      %484 = vmatprep.subr.bf16.mxu0 0
      %485 = vmatpush1.bf16.msra.mxu0 %v466
      %486 = vmatprep.subr.bf16.mxu0 0
      %487 = vmatpush1.bf16.msra.mxu0 %v467
      %488 = vmatprep.subr.bf16.mxu0 0
      %489 = vmatpush1.bf16.msra.mxu0 %v468
      %490 = vmatprep.subr.bf16.mxu0 0
      %491 = vmatpush1.bf16.msra.mxu0 %v469
      %492 = vmatprep.subr.bf16.mxu0 0
      %493 = vmatpush1.bf16.msra.mxu0 %v470
      %494 = vmatprep.subr.bf16.mxu0 0
      %495 = vmatpush1.bf16.msra.mxu0 %v471
      %496 = vmatprep.subr.bf16.mxu0 0
      %497 = vmatpush1.bf16.msra.mxu0 0
      %498 = vmatprep.subr.bf16.mxu0 0
      %499 = vmatpush1.bf16.msra.mxu0 0
      %500 = vmatprep.subr.bf16.mxu0 0
      %501 = vmatpush1.bf16.msra.mxu0 0
      %502 = vmatprep.subr.bf16.mxu0 0
      %503 = vmatpush1.bf16.msra.mxu0 0
      %504 = vmatprep.subr.bf16.mxu0 0
      %505 = vmatpush1.bf16.msra.mxu0 0
      %506 = vmatprep.subr.bf16.mxu0 0
      %507 = vmatpush1.bf16.msra.mxu0 0
      %508 = vmatprep.subr.bf16.mxu0 0
      %509 = vmatpush1.bf16.msra.mxu0 0
      %510 = vmatprep.subr.bf16.mxu0 0
      %511 = vmatpush1.bf16.msra.mxu0 0
      %512 = vmatprep.mubr.bf16.mxu0 0
      %513 = vmatmul.mubr.bf16.gmra.mrb[0].mxu0 %v422
      %v514 = vpop.f32.mrb[0].mxu0
      %v515 = vadd.f32 %v430, %v514
      %v516 = vpop.f32.mrb[0].mxu0
      %v517 = vpop.f32.mrb[0].mxu0
      %v518 = vadd.f32 %v430, %v517
      %v519 = vpop.f32.mrb[0].mxu0
      %520 = vmatprep.mubr.bf16.mxu0 0
      %521 = vmatmul.mubr.bf16.gmra.mrb[0].mxu0 %v423
      %v522 = vpop.f32.mrb[0].mxu0
      %v523 = vadd.f32 %v430, %v522
      %v524 = vpop.f32.mrb[0].mxu0
      %v525 = vpop.f32.mrb[0].mxu0
      %v526 = vadd.f32 %v430, %v525
      %v527 = vpop.f32.mrb[0].mxu0
      %528 = vmatprep.mubr.bf16.mxu0 0
      %529 = vmatmul.mubr.bf16.gmra.mrb[0].mxu0 %v424
      %v530 = vpop.f32.mrb[0].mxu0
      %v531 = vadd.f32 %v430, %v530
      %v532 = vpop.f32.mrb[0].mxu0
      %v533 = vpop.f32.mrb[0].mxu0
      %v534 = vadd.f32 %v430, %v533
      %v535 = vpop.f32.mrb[0].mxu0
      %536 = vmatprep.mubr.bf16.mxu0 0
      %537 = vmatmul.mubr.bf16.gmra.mrb[0].mxu0 %v425
      %v538 = vpop.f32.mrb[0].mxu0
      %v539 = vadd.f32 %v430, %v538
      %v540 = vpop.f32.mrb[0].mxu0
      %v541 = vpop.f32.mrb[0].mxu0
      %v542 = vadd.f32 %v430, %v541
      %v543 = vpop.f32.mrb[0].mxu0
      %544 = vdwg.mxu0
      %v545 = vmax.f32 %v515, 0.0
      %v546 = vmax.f32 %v518, 0.0
      %v547 = vmax.f32 %v523, 0.0
      %v548 = vmax.f32 %v526, 0.0
      %v549 = vmax.f32 %v531, 0.0
      %v550 = vmax.f32 %v534, 0.0
      %v551 = vmax.f32 %v539, 0.0
      %v552 = vmax.f32 %v542, 0.0
      %v553 = vld [vmem:[%s5] sm:$0xf]
      %v554 = vld [vmem:[%s5 + $0x4] sm:$0xf]
      %v555 = vld [vmem:[%s5 + $0x8] sm:$0xf]
      %v556 = vld [vmem:[%s5 + $0xc] sm:$0xf]
      %v557 = vld [vmem:[%s5 + $0x10] sm:$0xf]
      %v558 = vld [vmem:[%s5 + $0x14] sm:$0xf]
      %v559 = vld [vmem:[%s5 + $0x18] sm:$0xf]
      %v560 = vld [vmem:[%s5 + $0x1c] sm:$0xf]
      %v561 = vld [vmem:[%s5 + $0x20] sm:$0xf]
      %v562 = vld [vmem:[%s5 + $0x24] sm:$0xf]
      %v563 = vld [vmem:[%s5 + $0x28] sm:$0xf]
      %v564 = vld [vmem:[%s5 + $0x2c] sm:$0xf]
      %v565 = vld [vmem:[%s5 + $0x30] sm:$0xf]
      %v566 = vld [vmem:[%s5 + $0x34] sm:$0xf]
      %v567 = vld [vmem:[%s5 + $0x38] sm:$0xf]
      %v568 = vld [vmem:[%s5 + $0x3c] sm:$0xf]
      %v569 = vld [vmem:[%s6] sm:$0x1]
      %v570 = vpack.c.bf16 %v546, %v545
      %v571 = vpack.c.bf16 %v548, %v547
      %v572 = vpack.c.bf16 %v550, %v549
      %v573 = vpack.c.bf16 %v552, %v551
      %v575 = vlaneseq
      %v576 = vshrl.u32 %v575, 7
      %v577 = vsub.s32 0, %v576
      %v578 = vrot.slane %v569, %v577
      %v596 = vunpack.c.l.b16 %v553
      %v597 = vunpack.c.l.b16 %v554
      %v598 = vunpack.c.l.b16 %v555
      %v599 = vunpack.c.l.b16 %v556
      %v600 = vunpack.c.l.b16 %v557
      %v601 = vunpack.c.l.b16 %v558
      %v602 = vunpack.c.l.b16 %v559
      %v603 = vunpack.c.l.b16 %v560
      %v604 = vunpack.c.l.b16 %v561
      %v605 = vunpack.c.l.b16 %v562
      %v606 = vunpack.c.l.b16 %v563
      %v607 = vunpack.c.l.b16 %v564
      %v608 = vunpack.c.l.b16 %v565
      %v609 = vunpack.c.l.b16 %v566
      %v610 = vunpack.c.l.b16 %v567
      %v611 = vunpack.c.l.b16 %v568
      %v612 = vpack.c.b16 %v597, %v596
      %v613 = vpack.c.b16 %v599, %v598
      %v614 = vpack.c.b16 %v601, %v600
      %v615 = vpack.c.b16 %v603, %v602
      %v616 = vpack.c.b16 %v605, %v604
      %v617 = vpack.c.b16 %v607, %v606
      %v618 = vpack.c.b16 %v609, %v608
      %v619 = vpack.c.b16 %v611, %v610
      %628 = vmatprep.subr.bf16.mxu0 0
      %629 = vmatpush1.bf16.msra.mxu0 %v612
      %630 = vmatprep.subr.bf16.mxu0 0
      %631 = vmatpush1.bf16.msra.mxu0 %v613
      %632 = vmatprep.subr.bf16.mxu0 0
      %633 = vmatpush1.bf16.msra.mxu0 %v614
      %634 = vmatprep.subr.bf16.mxu0 0
      %635 = vmatpush1.bf16.msra.mxu0 %v615
      %636 = vmatprep.subr.bf16.mxu0 0
      %637 = vmatpush1.bf16.msra.mxu0 %v616
      %638 = vmatprep.subr.bf16.mxu0 0
      %639 = vmatpush1.bf16.msra.mxu0 %v617
      %640 = vmatprep.subr.bf16.mxu0 0
      %641 = vmatpush1.bf16.msra.mxu0 %v618
      %642 = vmatprep.subr.bf16.mxu0 0
      %643 = vmatpush1.bf16.msra.mxu0 %v619
      %644 = vmatprep.subr.bf16.mxu0 0
      %645 = vmatpush1.bf16.msra.mxu0 0
      %646 = vmatprep.subr.bf16.mxu0 0
      %647 = vmatpush1.bf16.msra.mxu0 0
      %648 = vmatprep.subr.bf16.mxu0 0
      %649 = vmatpush1.bf16.msra.mxu0 0
      %650 = vmatprep.subr.bf16.mxu0 0
      %651 = vmatpush1.bf16.msra.mxu0 0
      %652 = vmatprep.subr.bf16.mxu0 0
      %653 = vmatpush1.bf16.msra.mxu0 0
      %654 = vmatprep.subr.bf16.mxu0 0
      %655 = vmatpush1.bf16.msra.mxu0 0
      %656 = vmatprep.subr.bf16.mxu0 0
      %657 = vmatpush1.bf16.msra.mxu0 0
      %658 = vmatprep.subr.bf16.mxu0 0
      %659 = vmatpush1.bf16.msra.mxu0 0
      %660 = vmatprep.mubr.bf16.mxu0 0
      %661 = vmatmul.mubr.bf16.gmra.mrb[0].mxu0 %v570
      %v662 = vpop.f32.mrb[0].mxu0
      %v663 = vadd.f32 %v578, %v662
      %v664 = vpop.f32.mrb[0].mxu0
      %v665 = vpop.f32.mrb[0].mxu0
      %v666 = vadd.f32 %v578, %v665
      %v667 = vpop.f32.mrb[0].mxu0
      %668 = vmatprep.mubr.bf16.mxu0 0
      %669 = vmatmul.mubr.bf16.gmra.mrb[0].mxu0 %v571
      %v670 = vpop.f32.mrb[0].mxu0
      %v671 = vadd.f32 %v578, %v670
      %v672 = vpop.f32.mrb[0].mxu0
      %v673 = vpop.f32.mrb[0].mxu0
      %v674 = vadd.f32 %v578, %v673
      %v675 = vpop.f32.mrb[0].mxu0
      %676 = vmatprep.mubr.bf16.mxu0 0
      %677 = vmatmul.mubr.bf16.gmra.mrb[0].mxu0 %v572
      %v678 = vpop.f32.mrb[0].mxu0
      %v679 = vadd.f32 %v578, %v678
      %v680 = vpop.f32.mrb[0].mxu0
      %v681 = vpop.f32.mrb[0].mxu0
      %v682 = vadd.f32 %v578, %v681
      %v683 = vpop.f32.mrb[0].mxu0
      %684 = vmatprep.mubr.bf16.mxu0 0
      %685 = vmatmul.mubr.bf16.gmra.mrb[0].mxu0 %v573
      %v686 = vpop.f32.mrb[0].mxu0
      %v687 = vadd.f32 %v578, %v686
      %v688 = vpop.f32.mrb[0].mxu0
      %v689 = vpop.f32.mrb[0].mxu0
      %v690 = vadd.f32 %v578, %v689
      %v691 = vpop.f32.mrb[0].mxu0
      %692 = vdwg.mxu0
      %v693 = vmax.f32 %v663, 0.0
      %v694 = vmax.f32 %v666, 0.0
      %v695 = vmax.f32 %v671, 0.0
      %v696 = vmax.f32 %v674, 0.0
      %v697 = vmax.f32 %v679, 0.0
      %v698 = vmax.f32 %v682, 0.0
      %v699 = vmax.f32 %v687, 0.0
      %v700 = vmax.f32 %v690, 0.0
      %v701 = vadd.f32 %v693, %v397
      %v702 = vadd.f32 %v694, %v398
      %v703 = vadd.f32 %v695, %v399
      %v704 = vadd.f32 %v696, %v400
      %v705 = vadd.f32 %v697, %v401
      %v706 = vadd.f32 %v698, %v402
      %v707 = vadd.f32 %v699, %v403
      %v708 = vadd.f32 %v700, %v404
      %v709 = vpack.c.bf16 %v702, %v701
      %v710 = vpack.c.bf16 %v704, %v703
      %v711 = vpack.c.bf16 %v706, %v705
      %v712 = vpack.c.bf16 %v708, %v707
      %v717 = vunpack.c.l.b16 %v709
      %v718 = vunpack.c.h.b16 %v709
      %v719 = vunpack.c.l.b16 %v710
      %v720 = vunpack.c.h.b16 %v710
      %v721 = vunpack.c.l.b16 %v711
      %v722 = vunpack.c.h.b16 %v711
      %v723 = vunpack.c.l.b16 %v712
      %v724 = vunpack.c.h.b16 %v712
      %v725 = vpack.c.b16 %v717, %v717
      %v726 = vpack.c.b16 %v718, %v718
      %v727 = vpack.c.b16 %v719, %v719
      %v728 = vpack.c.b16 %v720, %v720
      %v729 = vpack.c.b16 %v721, %v721
      %v730 = vpack.c.b16 %v722, %v722
      %v731 = vpack.c.b16 %v723, %v723
      %v732 = vpack.c.b16 %v724, %v724
      %741 = vst [vmem:[%s350] sm:$0xf] %v725
      %742 = vst [vmem:[%s350 + $0x4] sm:$0xf] %v726
      %743 = vst [vmem:[%s350 + $0x8] sm:$0xf] %v727
      %744 = vst [vmem:[%s350 + $0xc] sm:$0xf] %v728
      %745 = vst [vmem:[%s350 + $0x10] sm:$0xf] %v729
      %746 = vst [vmem:[%s350 + $0x14] sm:$0xf] %v730
      %747 = vst [vmem:[%s350 + $0x18] sm:$0xf] %v731
      %748 = vst [vmem:[%s350 + $0x1c] sm:$0xf] %v732
      %v749 = vadd.f32 %v701, %v702
      %v750 = vadd.f32 %v749, %v703
      %v751 = vadd.f32 %v750, %v704
      %v752 = vadd.f32 %v751, %v705
      %v753 = vadd.f32 %v752, %v706
      %v754 = vadd.f32 %v753, %v707
      %v755 = vadd.f32 %v754, %v708
      %v756 = vrot.slane %v755, 4
      %v757 = vadd.f32 %v755, %v756
      %v758 = vrot.slane %v757, 2
      %v759 = vadd.f32 %v757, %v758
      %v760 = vrot.slane %v759, 1
      %v761 = vadd.f32 %v759, %v760
      %762 = vst [vmem:[%s354] sm:$0x1] %v761
      %v763 = vmul.f32 %v701, %v701
      %v764 = vmul.f32 %v702, %v702
      %v765 = vmul.f32 %v703, %v703
      %v766 = vmul.f32 %v704, %v704
      %v767 = vmul.f32 %v705, %v705
      %v768 = vmul.f32 %v706, %v706
      %v769 = vmul.f32 %v707, %v707
      %v770 = vmul.f32 %v708, %v708
      %v771 = vadd.f32 %v763, %v764
      %v772 = vadd.f32 %v771, %v765
      %v773 = vadd.f32 %v772, %v766
      %v774 = vadd.f32 %v773, %v767
      %v775 = vadd.f32 %v774, %v768
      %v776 = vadd.f32 %v775, %v769
      %v777 = vadd.f32 %v776, %v770
      %v778 = vrot.slane %v777, 4
      %v779 = vadd.f32 %v777, %v778
      %v780 = vrot.slane %v779, 2
      %v781 = vadd.f32 %v779, %v780
      %v782 = vrot.slane %v781, 1
      %v783 = vadd.f32 %v781, %v782
      %784 = vst [vmem:[%s357] sm:$0x1] %v783
      %s785 = smul.u32 4, %s21
      %p786 = scmp.lt.s32.totalorder %s785, 15
      %s787 = scalar_select %p786, %s785, 15
      %s788 = smul.addr %s787, 2
      %s789 = smul.addr %s788, 4
      %s790 = scalar_lea.vmem %s7, %s789
      %p791 = scmp.lt.s32.totalorder %s21, 3
      %s792 = scalar_select %p791, %s21, 3
      %s793 = scalar_lea.vmem %s8, %s792
      %p794 = scmp.lt.s32.totalorder %s21, 3
      %s795 = scalar_select %p794, %s21, 3
      %s796 = scalar_lea.vmem %s9, %s795
      // Predicated region
      $region49: #{_lambda_.5} parent=47 // pred_check
        %p797 = pneg %p191
      $region50: #{_lambda_.5} parent=47 // pred_check_branch
        %799 = sbr.rel (%p797) target = $region52
      $region51: #{_lambda_.5} parent=47 // pred_region
        %s800 = smul.u32 4, %s21
      $region52: #{_lambda_.5} parent=47 // pred_fallthru
        _
      // Predicated region
      $region53: #{_lambda_.5} parent=47 // pred_check
        %p801 = pneg %p217
      $region54: #{_lambda_.5} parent=47 // pred_check_branch
        %803 = sbr.rel (%p801) target = $region56
      $region55: #{_lambda_.5} parent=47 // pred_region
        _
      $region56: #{_lambda_.5} parent=47 // pred_fallthru
        _
      // Predicated region
      $region57: #{_lambda_.5} parent=47 // pred_check
        %p804 = pneg %p243
      $region58: #{_lambda_.5} parent=47 // pred_check_branch
        %806 = sbr.rel (%p804) target = $region60
      $region59: #{_lambda_.5} parent=47 // pred_region
        _
      $region60: #{_lambda_.5} parent=47 // pred_fallthru
        _
    $region48: #{_lambda_.5} parent=5 // pred_fallthru
      _
    %p807 = scmp.le.s32.totalorder 2, %s16
    // Predicated region
    $region61: #{_lambda_.5} parent=5 // pred_check
      %p808 = pneg %p807
    $region62: #{_lambda_.5} parent=5 // pred_check_branch
      %810 = sbr.rel (%p808) target = $region64
    $region63: #{_lambda_.5} parent=5 // pred_region
      %s811 = ssub.s32 %s16, 2
      // Predicated region
      $region65: #{_lambda_.5} parent=63 // pred_check
        %p812 = pneg %p197
      $region66: #{_lambda_.5} parent=63 // pred_check_branch
        %814 = sbr.rel (%p812) target = $region68
      $region67: #{_lambda_.5} parent=63 // pred_region
        %s815 = smul.u32 4, %s22
        %p816 = scmp.lt.s32.totalorder %s815, 15
        %s817 = scalar_select %p816, %s815, 15
        %s818 = smul.addr %s817, 2
        %s819 = smul.addr %s818, 4
        %s820 = scalar_lea.vmem %s7, %s819
      $region68: #{_lambda_.5} parent=63 // pred_fallthru
        _
      // Predicated region
      $region69: #{_lambda_.5} parent=63 // pred_check
        %p821 = pneg %p223
      $region70: #{_lambda_.5} parent=63 // pred_check_branch
        %823 = sbr.rel (%p821) target = $region72
      $region71: #{_lambda_.5} parent=63 // pred_region
        %p824 = scmp.lt.s32.totalorder %s22, 3
        %s825 = scalar_select %p824, %s22, 3
        %s826 = scalar_lea.vmem %s8, %s825
      $region72: #{_lambda_.5} parent=63 // pred_fallthru
        _
      // Predicated region
      $region73: #{_lambda_.5} parent=63 // pred_check
        %p827 = pneg %p249
      $region74: #{_lambda_.5} parent=63 // pred_check_branch
        %829 = sbr.rel (%p827) target = $region76
      $region75: #{_lambda_.5} parent=63 // pred_region
        %p830 = scmp.lt.s32.totalorder %s22, 3
        %s831 = scalar_select %p830, %s22, 3
        %s832 = scalar_lea.vmem %s9, %s831
      $region76: #{_lambda_.5} parent=63 // pred_fallthru
        _
    $region64: #{_lambda_.5} parent=5 // pred_fallthru
      _
  $region6: #{_lambda_.5} parent=0 // loop_footer
    %s20 = sadd.s32 1, %s16
  $region7: #{_lambda_.5} parent=0 // loop_footer_branch
    %15 = sbr.rel target = $region3
  $region8: #{_lambda_.5} parent=0 // loop_exit
    _

</llo_original>
